<compile_context>
chip_gen: v7x
topology: tpu7x:2x2x1
jax: 0.10.0
libtpu: 0.0.40
codegen_flags: <defaults>
</compile_context>

<pallas_src>
import jax
import jax.numpy as jnp
from jax import lax
from jax.experimental import pallas as pl
from jax.experimental.pallas import tpu as pltpu


def _add_relu_conv1x1_kernel(a_ref, b_ref, w_ref, o_ref):
    # Elementwise add + ReLU in f32 on the VPU (v5e has no bf16 VALU), then
    # cast the matmul operand to bf16 so the MXU runs native bf16 passes with
    # an f32 accumulator.
    x = jnp.maximum(a_ref[...] + b_ref[...], 0.0).astype(jnp.bfloat16)
    # (c_blk, C_in) . (C_in, M) -> (c_blk, M), contracting over C_in.
    o_ref[...] = lax.dot_general(
        w_ref[...],
        x,
        dimension_numbers=(((1,), (0,)), ((), ())),
        preferred_element_type=jnp.float32,
    ).astype(o_ref.dtype)


def add_relu_conv1x1(x288, x280, weight_bf16, *, c_blk=128):
    """x288, x280: (1, C_in, H, W) f32; weight_bf16: (C_out, C_in, 1, 1) bf16."""
    N, C_in, H, W = x288.shape
    C_out = weight_bf16.shape[0]
    assert N == 1, "1x1-conv-as-matmul view assumes batch == 1 (module spec)"
    M = N * H * W

    # Free (zero-copy) views of the NCHW tensors -- no transposes anywhere.
    a = x288.reshape(C_in, M)
    b = x280.reshape(C_in, M)
    w = weight_bf16.reshape(C_out, C_in)

    # Split C_out into 2 blocks of 128: engages both v7x TensorCores via the
    # "parallel" grid axis; harmless (sequential, activations fetched once) on
    # v5e/v6e.  VMEM is a non-issue (~4 MiB total with double-buffering).
    n_blocks = pl.cdiv(C_out, c_blk)

    out = pl.pallas_call(
        _add_relu_conv1x1_kernel,
        out_shape=jax.ShapeDtypeStruct((C_out, M), x288.dtype),
        grid=(n_blocks,),
        in_specs=[
            # Activations: one full-resident block (constant block index).
            pl.BlockSpec((C_in, M), lambda i: (0, 0)),
            pl.BlockSpec((C_in, M), lambda i: (0, 0)),
            # Weight: tiled along C_out so the grid axis is truly parallel.
            pl.BlockSpec((c_blk, C_in), lambda i: (i, 0)),
        ],
        # Output block (128, 196): last dim equals the full array dim, so the
        # (8,128) rule is satisfied; keeping (C_out, M) layout makes the HBM
        # result a free view of NCHW (worth more than a fully lane-dense tail).
        out_specs=pl.BlockSpec((c_blk, M), lambda i: (i, 0)),
        compiler_params=pltpu.CompilerParams(
            dimension_semantics=("parallel",),
        ),
        cost_estimate=pl.CostEstimate(
            flops=2 * C_out * C_in * M,
            transcendentals=0,
            bytes_accessed=(a.size + b.size) * 4 + w.size * 2 + C_out * M * 4,
        ),
    )(a, b, w)

    # (C_out, M) is exactly the NCHW flattening of the output: free view back.
    return out.reshape(N, C_out, H, W)


if __name__ == "__main__":
    key = jax.random.PRNGKey(0)
    k1, k2, k3 = jax.random.split(key, 3)

    N, C_in, H, W, C_out = 1, 1024, 14, 14, 256
    x288 = jax.random.normal(k1, (N, C_in, H, W), dtype=jnp.float32)
    x280 = jax.random.normal(k2, (N, C_in, H, W), dtype=jnp.float32)
    # Deterministic conv weight (kaiming-ish scale), shape (C_out, C_in, 1, 1).
    weight = jax.random.normal(k3, (C_out, C_in, 1, 1), dtype=jnp.float32) * (
        1.0 / jnp.sqrt(C_in)
    )

    # Weight is a module constant: cast to bf16 once, outside the per-call
    # path (under jit this folds away entirely).
    weight_bf16 = weight.astype(jnp.bfloat16)

    out = add_relu_conv1x1(x288, x280, weight_bf16)
    out = jax.block_until_ready(out)

    # Reference: plain f32 JAX with the same semantics as the PyTorch module.
    relu = jnp.maximum(x288 + x280, 0.0)
    ref = jnp.einsum("nchw,oc->nohw", relu, weight.reshape(C_out, C_in))
    assert out.shape == (N, C_out, H, W)
    # bf16 MXU operands (f32 accumulate) shift results at roughly the 1e-2
    # level vs. the pure-f32 reference; tolerance chosen accordingly.
    assert jnp.allclose(out, ref, atol=2e-2, rtol=2e-2), float(
        jnp.max(jnp.abs(out - ref))
    )

    print("KERNEL_OK")
</pallas_src>

<mosaic_0001>
module attributes {stable_mosaic.version = 11 : i64} {
  func.func @_add_relu_conv1x1_kernel(%arg0: i32, %arg1: memref<1024x196xf32, #tpu.memory_space<vmem>>, %arg2: memref<1024x196xf32, #tpu.memory_space<vmem>>, %arg3: memref<128x1024xbf16, #tpu.memory_space<vmem>>, %arg4: memref<128x196xf32, #tpu.memory_space<vmem>>) attributes {dimension_semantics = [#tpu.dimension_semantics<parallel>], iteration_bounds = array<i64: 2>, scalar_prefetch = 0 : i64, scratch_operands = 0 : i64, tpu.core_type = #tpu.core_type<tc>, window_params = [{pipeline_mode = #tpu.pipeline_mode<synchronous>, transform_indices = @transform_0, window_bounds = array<i64: 1024, 196>}, {pipeline_mode = #tpu.pipeline_mode<synchronous>, transform_indices = @transform_1, window_bounds = array<i64: 1024, 196>}, {transform_indices = @transform_2, window_bounds = array<i64: 128, 1024>}, {transform_indices = @transform_3, window_bounds = array<i64: 128, 196>}]} {
    %c0 = arith.constant 0 : index
    %c0_0 = arith.constant 0 : index
    %0 = vector.load %arg1[%c0, %c0_0] : memref<1024x196xf32, #tpu.memory_space<vmem>>, vector<1024x196xf32>
    %c0_1 = arith.constant 0 : index
    %c0_2 = arith.constant 0 : index
    %1 = vector.load %arg2[%c0_1, %c0_2] : memref<1024x196xf32, #tpu.memory_space<vmem>>, vector<1024x196xf32>
    %2 = arith.addf %0, %1 : vector<1024x196xf32>
    %cst = arith.constant 0.000000e+00 : f32
    %3 = vector.broadcast %cst : f32 to vector<1024x196xf32>
    %4 = arith.maximumf %2, %3 : vector<1024x196xf32>
    %5 = arith.truncf %4 : vector<1024x196xf32> to vector<1024x196xbf16>
    %c0_3 = arith.constant 0 : index
    %c0_4 = arith.constant 0 : index
    %6 = vector.load %arg3[%c0_3, %c0_4] : memref<128x1024xbf16, #tpu.memory_space<vmem>>, vector<128x1024xbf16>
    %cst_5 = arith.constant dense<0.000000e+00> : vector<128x196xf32>
    %7 = tpu.matmul %6, %5, %cst_5 {dimension_numbers = #tpu.dot_dimension_numbers<[1], [0], [0], [1], [0, 0, 1, 1], [], []>} : vector<128x1024xbf16>, vector<1024x196xbf16>, vector<128x196xf32> -> vector<128x196xf32>
    %c0_6 = arith.constant 0 : index
    %c0_7 = arith.constant 0 : index
    %8 = vector.load %arg4[%c0_6, %c0_7] : memref<128x196xf32, #tpu.memory_space<vmem>>, vector<128x196xf32>
    tpu.vector_store %arg4[%c0_6, %c0_7], %7 {strides = array<i32>} : memref<128x196xf32, #tpu.memory_space<vmem>>, vector<128x196xf32>,
    return
  }
  func.func @transform_0(%arg0: i32) -> (i32, i32) {
    %c0_i32 = arith.constant 0 : i32
    %c0_i32_0 = arith.constant 0 : i32
    %c0_i32_1 = arith.constant 0 : i32
    return %c0_i32, %c0_i32_0 : i32, i32
  }
  func.func @transform_1(%arg0: i32) -> (i32, i32) {
    %c0_i32 = arith.constant 0 : i32
    %c0_i32_0 = arith.constant 0 : i32
    %c0_i32_1 = arith.constant 0 : i32
    return %c0_i32, %c0_i32_0 : i32, i32
  }
  func.func @transform_2(%arg0: i32) -> (i32, i32) {
    %c0_i32 = arith.constant 0 : i32
    %c0_i32_0 = arith.constant 0 : i32
    return %arg0, %c0_i32 : i32, i32
  }
  func.func @transform_3(%arg0: i32) -> (i32, i32) {
    %c0_i32 = arith.constant 0 : i32
    %c0_i32_0 = arith.constant 0 : i32
    return %arg0, %c0_i32 : i32, i32
  }
}

</mosaic_0001>

<llo_original>
// kernel: tpu_custom_call.1
$region0: #{tpu_custom_call.1}
  #allocation0 [shape = 'u32[]', space=smem, size = 0x4, offset = 0x4, fixed_abs, tag = 'smem constant byte address 0x4 - core index']
  #allocation1 [shape = 'u32[144,128]{1,0:T(1,128)}', space=vmem, size = 0x12000, scoped, tag = 'internal scratch']
  %s0 = inlined_call_operand.vmem [shape: f32[1024,196], index: 0, kind: input, shape index: {}]
  %s1 = inlined_call_operand.vmem [shape: f32[1024,196], index: 1, kind: input, shape index: {}]
  %s2 = inlined_call_operand.vmem [shape: bf16[256,1024], index: 2, kind: input, shape index: {}]
  %s3 = inlined_call_operand.vmem [shape: f32[256,196], index: 3, kind: output, shape index: {}]
  %s4 = sld [smem:[#allocation0]]
  $region45: #{tpu_custom_call.1} parent=0
    _
  %s6 = ssub.s32 1, %s4
  %s7 = scalar_select 0, %s6, %s4
  loop: start=0, step=1, limit=4
  $region2: #{tpu_custom_call.1} parent=0 // loop_pre_header
    _
  $region3: #{tpu_custom_call.1} parent=0 // loop_header
    %s9 = sphi 0, %s13
    %p10 = scmp.ge.s32.totalorder %s9, 4
    %s17 = sphi 0, %s17
    %s19 = sphi 0, %s17
    %s20 = sphi 0, %s19
    %s34 = sphi 0, %s20
    %s38 = sphi 0, %s38
    %s40 = sphi 0, %s38
    %s41 = sphi 0, %s40
    %s55 = sphi 0, %s41
    %s61 = sphi 0, %s63
    %s64 = sphi 0, %s61
    %s65 = sphi 0, %s64
    %s81 = sphi 0, %s65
    %s87 = sphi 0, %s89
    %s90 = sphi 0, %s87
    %s91 = sphi 0, %s90
    %s107 = sphi 0, %s91
  $region4: #{tpu_custom_call.1} parent=0 // loop_header_branch
    %12 = sbr.rel (%p10) target = $region8
  $region5: #{tpu_custom_call.1} parent=0 // loop_body
    %s14 = ssub.s32 %s9, 1
    %s15 = ssub.s32 %s9, 2
    %s16 = sadd.s32 %s9, 1
    %s18 = sadd.s32 %s17, 1
    %p21 = scmp.eq.s32.totalorder %s9, 1
    %p22 = scmp.ne.s32.totalorder %s17, %s19
    %p23 = scmp.eq.s32.totalorder %s9, 0
    %p24 = por %p22, %p23
    %p25 = scmp.ne.s32.totalorder %s17, %s19
    %p26 = scmp.eq.s32.totalorder %s14, 1
    %p27 = por %p25, %p26
    %p28 = scmp.ne.s32.totalorder %s19, %s20
    %p29 = scmp.eq.s32.totalorder %s14, 0
    %p30 = por %p28, %p29
    %p31 = scmp.ne.s32.totalorder %s19, %s20
    %p32 = scmp.eq.s32.totalorder %s15, 1
    %p33 = por %p31, %p32
    %p35 = scmp.ne.s32.totalorder %s20, %s34
    %p36 = scmp.eq.s32.totalorder %s15, 0
    %p37 = por %p35, %p36
    %s39 = sadd.s32 %s38, 1
    %p42 = scmp.eq.s32.totalorder %s9, 1
    %p43 = scmp.ne.s32.totalorder %s38, %s40
    %p44 = scmp.eq.s32.totalorder %s9, 0
    %p45 = por %p43, %p44
    %p46 = scmp.ne.s32.totalorder %s38, %s40
    %p47 = scmp.eq.s32.totalorder %s14, 1
    %p48 = por %p46, %p47
    %p49 = scmp.ne.s32.totalorder %s40, %s41
    %p50 = scmp.eq.s32.totalorder %s14, 0
    %p51 = por %p49, %p50
    %p52 = scmp.ne.s32.totalorder %s40, %s41
    %p53 = scmp.eq.s32.totalorder %s15, 1
    %p54 = por %p52, %p53
    %p56 = scmp.ne.s32.totalorder %s41, %s55
    %p57 = scmp.eq.s32.totalorder %s15, 0
    %p58 = por %p56, %p57
    %s59 = ssub.s32 %s9, %s16
    %p60 = scmp.eq.s32.totalorder %s59, 0
    %s62 = sadd.s32 %s61, 1
    %s63 = scalar_select %p60, %s61, %s62
    %p66 = pneg %p60
    %p67 = scmp.eq.s32.totalorder %s9, 1
    %p68 = por %p66, %p67
    %p69 = scmp.ne.s32.totalorder %s61, %s64
    %p70 = scmp.eq.s32.totalorder %s9, 0
    %p71 = por %p69, %p70
    %p72 = scmp.ne.s32.totalorder %s61, %s64
    %p73 = scmp.eq.s32.totalorder %s14, 1
    %p74 = por %p72, %p73
    %p75 = scmp.ne.s32.totalorder %s64, %s65
    %p76 = scmp.eq.s32.totalorder %s14, 0
    %p77 = por %p75, %p76
    %p78 = scmp.ne.s32.totalorder %s64, %s65
    %p79 = scmp.eq.s32.totalorder %s15, 1
    %p80 = por %p78, %p79
    %p82 = scmp.ne.s32.totalorder %s65, %s81
    %p83 = scmp.eq.s32.totalorder %s15, 0
    %p84 = por %p82, %p83
    %s85 = ssub.s32 %s9, %s16
    %p86 = scmp.eq.s32.totalorder %s85, 0
    %s88 = sadd.s32 %s87, 1
    %s89 = scalar_select %p86, %s87, %s88
    %p92 = pneg %p86
    %p93 = scmp.eq.s32.totalorder %s9, 1
    %p94 = por %p92, %p93
    %p95 = scmp.ne.s32.totalorder %s87, %s90
    %p96 = scmp.eq.s32.totalorder %s9, 0
    %p97 = por %p95, %p96
    %p98 = scmp.ne.s32.totalorder %s87, %s90
    %p99 = scmp.eq.s32.totalorder %s14, 1
    %p100 = por %p98, %p99
    %p101 = scmp.ne.s32.totalorder %s90, %s91
    %p102 = scmp.eq.s32.totalorder %s14, 0
    %p103 = por %p101, %p102
    %p104 = scmp.ne.s32.totalorder %s90, %s91
    %p105 = scmp.eq.s32.totalorder %s15, 1
    %p106 = por %p104, %p105
    %p108 = scmp.ne.s32.totalorder %s91, %s107
    %p109 = scmp.eq.s32.totalorder %s15, 0
    %p110 = por %p108, %p109
    %p111 = scmp.le.s32.totalorder 1, %s9
    %p112 = scmp.lt.s32.totalorder %s9, 3
    %p113 = pnand %p111, %p112
    %p114 = pneg %p113
    // Predicated region
    $region9: #{tpu_custom_call.1} parent=5 // pred_check
      _
    $region10: #{tpu_custom_call.1} parent=5 // pred_check_branch
      %116 = sbr.rel (%p113) target = $region12
    $region11: #{tpu_custom_call.1} parent=5 // pred_region
      %s117 = ssub.s32 %s9, 1
      // Predicated region
      $region13: #{tpu_custom_call.1} parent=11 // pred_check
        %p118 = pneg %p30
      $region14: #{tpu_custom_call.1} parent=11 // pred_check_branch
        %120 = sbr.rel (%p118) target = $region16
      $region15: #{tpu_custom_call.1} parent=11 // pred_region
        _
      $region16: #{tpu_custom_call.1} parent=11 // pred_fallthru
        _
      // Predicated region
      $region17: #{tpu_custom_call.1} parent=11 // pred_check
        %p121 = pneg %p51
      $region18: #{tpu_custom_call.1} parent=11 // pred_check_branch
        %123 = sbr.rel (%p121) target = $region20
      $region19: #{tpu_custom_call.1} parent=11 // pred_region
        _
      $region20: #{tpu_custom_call.1} parent=11 // pred_fallthru
        _
    $region12: #{tpu_custom_call.1} parent=5 // pred_fallthru
      _
    %p124 = scmp.lt.s32.totalorder %s9, 2
    // Predicated region
    $region21: #{tpu_custom_call.1} parent=5 // pred_check
      %p125 = pneg %p124
    $region22: #{tpu_custom_call.1} parent=5 // pred_check_branch
      %127 = sbr.rel (%p125) target = $region24
    $region23: #{tpu_custom_call.1} parent=5 // pred_region
      // Predicated region
      $region25: #{tpu_custom_call.1} parent=23 // pred_check
        %p128 = pneg %p71
      $region26: #{tpu_custom_call.1} parent=23 // pred_check_branch
        %130 = sbr.rel (%p128) target = $region28
      $region27: #{tpu_custom_call.1} parent=23 // pred_region
        %s131 = smul.u32 16, %s9
        %p132 = scmp.lt.s32.totalorder %s131, 31
        %s133 = scalar_select %p132, %s131, 31
        %s134 = smul.addr %s133, 8
        %s135 = smul.addr %s134, 4
        %s136 = scalar_lea.vmem %s2, %s135
        %s137 = smul.u32 16, %s9
      $region28: #{tpu_custom_call.1} parent=23 // pred_fallthru
        _
    $region24: #{tpu_custom_call.1} parent=5 // pred_fallthru
      _
    %p138 = scmp.le.s32.totalorder 1, %s9
    %p139 = scmp.lt.s32.totalorder %s9, 3
    %p140 = pnand %p138, %p139
    %p141 = pneg %p140
    // Predicated region
    $region29: #{tpu_custom_call.1} parent=5 // pred_check
      _
    $region30: #{tpu_custom_call.1} parent=5 // pred_check_branch
      %143 = sbr.rel (%p140) target = $region32
    $region31: #{tpu_custom_call.1} parent=5 // pred_region
      %s144 = ssub.s32 %s9, 1
      %p145 = pneg %p30
      %p146 = pneg %p27
      %p147 = pneg %p51
      %p148 = pneg %p48
      %s149 = smul.u32 16, %s14
      %p150 = scmp.lt.s32.totalorder %s149, 31
      %s151 = scalar_select %p150, %s149, 31
      %s152 = smul.addr %s151, 8
      %s153 = smul.addr %s152, 4
      %s154 = scalar_lea.vmem %s2, %s153
      %p155 = pneg %p77
      %p156 = pneg %p74
      %p157 = pneg %p103
      %p158 = pneg %p100
      %s159 = smul.u32 16, %s14
      %p160 = scmp.lt.s32.totalorder %s159, 31
      %s161 = scalar_select %p160, %s159, 31
      %s162 = smul.addr %s161, 2
      %s163 = smul.addr %s162, 8
      %s164 = scalar_lea.vmem %s3, %s163
      %s165 = smul.u32 16, %s14
      %p166 = scmp.lt.s32.totalorder %s165, 31
      %s167 = scalar_select %p166, %s165, 31
      %s168 = smul.addr %s167, 8
      %s169 = smul.addr %s168, 4
      %s170 = scalar_lea.vmem %s2, %s169
      %s171 = smul.u32 16, %s14
      %s172 = smul.u32 16, %s14
      %p173 = scmp.lt.s32.totalorder %s172, 31
      %s174 = scalar_select %p173, %s172, 31
      %s175 = smul.addr %s174, 2
      %s176 = smul.addr %s175, 8
      %s177 = scalar_lea.vmem %s3, %s176
      %s178 = smul.u32 16, %s14
      %v179 = vld [vmem:[%s0] sm:$0xff]
      %v180 = vld [vmem:[%s0 + $0x8] sm:$0xff]
      %v181 = vld [vmem:[%s0 + $0x10] sm:$0xff]
      %v182 = vld [vmem:[%s0 + $0x18] sm:$0xff]
      %v183 = vld [vmem:[%s0 + $0x20] sm:$0xff]
      %v184 = vld [vmem:[%s0 + $0x28] sm:$0xff]
      %v185 = vld [vmem:[%s0 + $0x30] sm:$0xff]
      %v186 = vld [vmem:[%s0 + $0x38] sm:$0xff]
      %v187 = vld [vmem:[%s0 + $0x40] sm:$0xff]
      %v188 = vld [vmem:[%s0 + $0x48] sm:$0xff]
      %v189 = vld [vmem:[%s0 + $0x50] sm:$0xff]
      %v190 = vld [vmem:[%s0 + $0x58] sm:$0xff]
      %v191 = vld [vmem:[%s0 + $0x60] sm:$0xff]
      %v192 = vld [vmem:[%s0 + $0x68] sm:$0xff]
      %v193 = vld [vmem:[%s0 + $0x70] sm:$0xff]
      %v194 = vld [vmem:[%s0 + $0x78] sm:$0xff]
      %v195 = vld [vmem:[%s0 + $0x80] sm:$0xff]
      %v196 = vld [vmem:[%s0 + $0x88] sm:$0xff]
      %v197 = vld [vmem:[%s0 + $0x90] sm:$0xff]
      %v198 = vld [vmem:[%s0 + $0x98] sm:$0xff]
      %v199 = vld [vmem:[%s0 + $0xa0] sm:$0xff]
      %v200 = vld [vmem:[%s0 + $0xa8] sm:$0xff]
      %v201 = vld [vmem:[%s0 + $0xb0] sm:$0xff]
      %v202 = vld [vmem:[%s0 + $0xb8] sm:$0xff]
      %v203 = vld [vmem:[%s0 + $0xc0] sm:$0xff]
      %v204 = vld [vmem:[%s0 + $0xc8] sm:$0xff]
      %v205 = vld [vmem:[%s0 + $0xd0] sm:$0xff]
      %v206 = vld [vmem:[%s0 + $0xd8] sm:$0xff]
      %v207 = vld [vmem:[%s0 + $0xe0] sm:$0xff]
      %v208 = vld [vmem:[%s0 + $0xe8] sm:$0xff]
      %v209 = vld [vmem:[%s0 + $0xf0] sm:$0xff]
      %v210 = vld [vmem:[%s0 + $0xf8] sm:$0xff]
      %v211 = vld [vmem:[%s0 + $0x100] sm:$0xff]
      %v212 = vld [vmem:[%s0 + $0x108] sm:$0xff]
      %v213 = vld [vmem:[%s0 + $0x110] sm:$0xff]
      %v214 = vld [vmem:[%s0 + $0x118] sm:$0xff]
      %v215 = vld [vmem:[%s0 + $0x120] sm:$0xff]
      %v216 = vld [vmem:[%s0 + $0x128] sm:$0xff]
      %v217 = vld [vmem:[%s0 + $0x130] sm:$0xff]
      %v218 = vld [vmem:[%s0 + $0x138] sm:$0xff]
      %v219 = vld [vmem:[%s0 + $0x140] sm:$0xff]
      %v220 = vld [vmem:[%s0 + $0x148] sm:$0xff]
      %v221 = vld [vmem:[%s0 + $0x150] sm:$0xff]
      %v222 = vld [vmem:[%s0 + $0x158] sm:$0xff]
      %v223 = vld [vmem:[%s0 + $0x160] sm:$0xff]
      %v224 = vld [vmem:[%s0 + $0x168] sm:$0xff]
      %v225 = vld [vmem:[%s0 + $0x170] sm:$0xff]
      %v226 = vld [vmem:[%s0 + $0x178] sm:$0xff]
      %v227 = vld [vmem:[%s0 + $0x180] sm:$0xff]
      %v228 = vld [vmem:[%s0 + $0x188] sm:$0xff]
      %v229 = vld [vmem:[%s0 + $0x190] sm:$0xff]
      %v230 = vld [vmem:[%s0 + $0x198] sm:$0xff]
      %v231 = vld [vmem:[%s0 + $0x1a0] sm:$0xff]
      %v232 = vld [vmem:[%s0 + $0x1a8] sm:$0xff]
      %v233 = vld [vmem:[%s0 + $0x1b0] sm:$0xff]
      %v234 = vld [vmem:[%s0 + $0x1b8] sm:$0xff]
      %v235 = vld [vmem:[%s0 + $0x1c0] sm:$0xff]
      %v236 = vld [vmem:[%s0 + $0x1c8] sm:$0xff]
      %v237 = vld [vmem:[%s0 + $0x1d0] sm:$0xff]
      %v238 = vld [vmem:[%s0 + $0x1d8] sm:$0xff]
      %v239 = vld [vmem:[%s0 + $0x1e0] sm:$0xff]
      %v240 = vld [vmem:[%s0 + $0x1e8] sm:$0xff]
      %v241 = vld [vmem:[%s0 + $0x1f0] sm:$0xff]
      %v242 = vld [vmem:[%s0 + $0x1f8] sm:$0xff]
      %v243 = vld [vmem:[%s0 + $0x200] sm:$0xff]
      %v244 = vld [vmem:[%s0 + $0x208] sm:$0xff]
      %v245 = vld [vmem:[%s0 + $0x210] sm:$0xff]
      %v246 = vld [vmem:[%s0 + $0x218] sm:$0xff]
      %v247 = vld [vmem:[%s0 + $0x220] sm:$0xff]
      %v248 = vld [vmem:[%s0 + $0x228] sm:$0xff]
      %v249 = vld [vmem:[%s0 + $0x230] sm:$0xff]
      %v250 = vld [vmem:[%s0 + $0x238] sm:$0xff]
      %v251 = vld [vmem:[%s0 + $0x240] sm:$0xff]
      %v252 = vld [vmem:[%s0 + $0x248] sm:$0xff]
      %v253 = vld [vmem:[%s0 + $0x250] sm:$0xff]
      %v254 = vld [vmem:[%s0 + $0x258] sm:$0xff]
      %v255 = vld [vmem:[%s0 + $0x260] sm:$0xff]
      %v256 = vld [vmem:[%s0 + $0x268] sm:$0xff]
      %v257 = vld [vmem:[%s0 + $0x270] sm:$0xff]
      %v258 = vld [vmem:[%s0 + $0x278] sm:$0xff]
      %v259 = vld [vmem:[%s0 + $0x280] sm:$0xff]
      %v260 = vld [vmem:[%s0 + $0x288] sm:$0xff]
      %v261 = vld [vmem:[%s0 + $0x290] sm:$0xff]
      %v262 = vld [vmem:[%s0 + $0x298] sm:$0xff]
      %v263 = vld [vmem:[%s0 + $0x2a0] sm:$0xff]
      %v264 = vld [vmem:[%s0 + $0x2a8] sm:$0xff]
      %v265 = vld [vmem:[%s0 + $0x2b0] sm:$0xff]
      %v266 = vld [vmem:[%s0 + $0x2b8] sm:$0xff]
      %v267 = vld [vmem:[%s0 + $0x2c0] sm:$0xff]
      %v268 = vld [vmem:[%s0 + $0x2c8] sm:$0xff]
      %v269 = vld [vmem:[%s0 + $0x2d0] sm:$0xff]
      %v270 = vld [vmem:[%s0 + $0x2d8] sm:$0xff]
      %v271 = vld [vmem:[%s0 + $0x2e0] sm:$0xff]
      %v272 = vld [vmem:[%s0 + $0x2e8] sm:$0xff]
      %v273 = vld [vmem:[%s0 + $0x2f0] sm:$0xff]
      %v274 = vld [vmem:[%s0 + $0x2f8] sm:$0xff]
      %v275 = vld [vmem:[%s0 + $0x300] sm:$0xff]
      %v276 = vld [vmem:[%s0 + $0x308] sm:$0xff]
      %v277 = vld [vmem:[%s0 + $0x310] sm:$0xff]
      %v278 = vld [vmem:[%s0 + $0x318] sm:$0xff]
      %v279 = vld [vmem:[%s0 + $0x320] sm:$0xff]
      %v280 = vld [vmem:[%s0 + $0x328] sm:$0xff]
      %v281 = vld [vmem:[%s0 + $0x330] sm:$0xff]
      %v282 = vld [vmem:[%s0 + $0x338] sm:$0xff]
      %v283 = vld [vmem:[%s0 + $0x340] sm:$0xff]
      %v284 = vld [vmem:[%s0 + $0x348] sm:$0xff]
      %v285 = vld [vmem:[%s0 + $0x350] sm:$0xff]
      %v286 = vld [vmem:[%s0 + $0x358] sm:$0xff]
      %v287 = vld [vmem:[%s0 + $0x360] sm:$0xff]
      %v288 = vld [vmem:[%s0 + $0x368] sm:$0xff]
      %v289 = vld [vmem:[%s0 + $0x370] sm:$0xff]
      %v290 = vld [vmem:[%s0 + $0x378] sm:$0xff]
      %v291 = vld [vmem:[%s0 + $0x380] sm:$0xff]
      %v292 = vld [vmem:[%s0 + $0x388] sm:$0xff]
      %v293 = vld [vmem:[%s0 + $0x390] sm:$0xff]
      %v294 = vld [vmem:[%s0 + $0x398] sm:$0xff]
      %v295 = vld [vmem:[%s0 + $0x3a0] sm:$0xff]
      %v296 = vld [vmem:[%s0 + $0x3a8] sm:$0xff]
      %v297 = vld [vmem:[%s0 + $0x3b0] sm:$0xff]
      %v298 = vld [vmem:[%s0 + $0x3b8] sm:$0xff]
      %v299 = vld [vmem:[%s0 + $0x3c0] sm:$0xff]
      %v300 = vld [vmem:[%s0 + $0x3c8] sm:$0xff]
      %v301 = vld [vmem:[%s0 + $0x3d0] sm:$0xff]
      %v302 = vld [vmem:[%s0 + $0x3d8] sm:$0xff]
      %v303 = vld [vmem:[%s0 + $0x3e0] sm:$0xff]
      %v304 = vld [vmem:[%s0 + $0x3e8] sm:$0xff]
      %v305 = vld [vmem:[%s0 + $0x3f0] sm:$0xff]
      %v306 = vld [vmem:[%s0 + $0x3f8] sm:$0xff]
      %v307 = vld [vmem:[%s0 + $0x400] sm:$0xff]
      %v308 = vld [vmem:[%s0 + $0x408] sm:$0xff]
      %v309 = vld [vmem:[%s0 + $0x410] sm:$0xff]
      %v310 = vld [vmem:[%s0 + $0x418] sm:$0xff]
      %v311 = vld [vmem:[%s0 + $0x420] sm:$0xff]
      %v312 = vld [vmem:[%s0 + $0x428] sm:$0xff]
      %v313 = vld [vmem:[%s0 + $0x430] sm:$0xff]
      %v314 = vld [vmem:[%s0 + $0x438] sm:$0xff]
      %v315 = vld [vmem:[%s0 + $0x440] sm:$0xff]
      %v316 = vld [vmem:[%s0 + $0x448] sm:$0xff]
      %v317 = vld [vmem:[%s0 + $0x450] sm:$0xff]
      %v318 = vld [vmem:[%s0 + $0x458] sm:$0xff]
      %v319 = vld [vmem:[%s0 + $0x460] sm:$0xff]
      %v320 = vld [vmem:[%s0 + $0x468] sm:$0xff]
      %v321 = vld [vmem:[%s0 + $0x470] sm:$0xff]
      %v322 = vld [vmem:[%s0 + $0x478] sm:$0xff]
      %v323 = vld [vmem:[%s0 + $0x480] sm:$0xff]
      %v324 = vld [vmem:[%s0 + $0x488] sm:$0xff]
      %v325 = vld [vmem:[%s0 + $0x490] sm:$0xff]
      %v326 = vld [vmem:[%s0 + $0x498] sm:$0xff]
      %v327 = vld [vmem:[%s0 + $0x4a0] sm:$0xff]
      %v328 = vld [vmem:[%s0 + $0x4a8] sm:$0xff]
      %v329 = vld [vmem:[%s0 + $0x4b0] sm:$0xff]
      %v330 = vld [vmem:[%s0 + $0x4b8] sm:$0xff]
      %v331 = vld [vmem:[%s0 + $0x4c0] sm:$0xff]
      %v332 = vld [vmem:[%s0 + $0x4c8] sm:$0xff]
      %v333 = vld [vmem:[%s0 + $0x4d0] sm:$0xff]
      %v334 = vld [vmem:[%s0 + $0x4d8] sm:$0xff]
      %v335 = vld [vmem:[%s0 + $0x4e0] sm:$0xff]
      %v336 = vld [vmem:[%s0 + $0x4e8] sm:$0xff]
      %v337 = vld [vmem:[%s0 + $0x4f0] sm:$0xff]
      %v338 = vld [vmem:[%s0 + $0x4f8] sm:$0xff]
      %v339 = vld [vmem:[%s0 + $0x500] sm:$0xff]
      %v340 = vld [vmem:[%s0 + $0x508] sm:$0xff]
      %v341 = vld [vmem:[%s0 + $0x510] sm:$0xff]
      %v342 = vld [vmem:[%s0 + $0x518] sm:$0xff]
      %v343 = vld [vmem:[%s0 + $0x520] sm:$0xff]
      %v344 = vld [vmem:[%s0 + $0x528] sm:$0xff]
      %v345 = vld [vmem:[%s0 + $0x530] sm:$0xff]
      %v346 = vld [vmem:[%s0 + $0x538] sm:$0xff]
      %v347 = vld [vmem:[%s0 + $0x540] sm:$0xff]
      %v348 = vld [vmem:[%s0 + $0x548] sm:$0xff]
      %v349 = vld [vmem:[%s0 + $0x550] sm:$0xff]
      %v350 = vld [vmem:[%s0 + $0x558] sm:$0xff]
      %v351 = vld [vmem:[%s0 + $0x560] sm:$0xff]
      %v352 = vld [vmem:[%s0 + $0x568] sm:$0xff]
      %v353 = vld [vmem:[%s0 + $0x570] sm:$0xff]
      %v354 = vld [vmem:[%s0 + $0x578] sm:$0xff]
      %v355 = vld [vmem:[%s0 + $0x580] sm:$0xff]
      %v356 = vld [vmem:[%s0 + $0x588] sm:$0xff]
      %v357 = vld [vmem:[%s0 + $0x590] sm:$0xff]
      %v358 = vld [vmem:[%s0 + $0x598] sm:$0xff]
      %v359 = vld [vmem:[%s0 + $0x5a0] sm:$0xff]
      %v360 = vld [vmem:[%s0 + $0x5a8] sm:$0xff]
      %v361 = vld [vmem:[%s0 + $0x5b0] sm:$0xff]
      %v362 = vld [vmem:[%s0 + $0x5b8] sm:$0xff]
      %v363 = vld [vmem:[%s0 + $0x5c0] sm:$0xff]
      %v364 = vld [vmem:[%s0 + $0x5c8] sm:$0xff]
      %v365 = vld [vmem:[%s0 + $0x5d0] sm:$0xff]
      %v366 = vld [vmem:[%s0 + $0x5d8] sm:$0xff]
      %v367 = vld [vmem:[%s0 + $0x5e0] sm:$0xff]
      %v368 = vld [vmem:[%s0 + $0x5e8] sm:$0xff]
      %v369 = vld [vmem:[%s0 + $0x5f0] sm:$0xff]
      %v370 = vld [vmem:[%s0 + $0x5f8] sm:$0xff]
      %v371 = vld [vmem:[%s0 + $0x600] sm:$0xff]
      %v372 = vld [vmem:[%s0 + $0x608] sm:$0xff]
      %v373 = vld [vmem:[%s0 + $0x610] sm:$0xff]
      %v374 = vld [vmem:[%s0 + $0x618] sm:$0xff]
      %v375 = vld [vmem:[%s0 + $0x620] sm:$0xff]
      %v376 = vld [vmem:[%s0 + $0x628] sm:$0xff]
      %v377 = vld [vmem:[%s0 + $0x630] sm:$0xff]
      %v378 = vld [vmem:[%s0 + $0x638] sm:$0xff]
      %v379 = vld [vmem:[%s0 + $0x640] sm:$0xff]
      %v380 = vld [vmem:[%s0 + $0x648] sm:$0xff]
      %v381 = vld [vmem:[%s0 + $0x650] sm:$0xff]
      %v382 = vld [vmem:[%s0 + $0x658] sm:$0xff]
      %v383 = vld [vmem:[%s0 + $0x660] sm:$0xff]
      %v384 = vld [vmem:[%s0 + $0x668] sm:$0xff]
      %v385 = vld [vmem:[%s0 + $0x670] sm:$0xff]
      %v386 = vld [vmem:[%s0 + $0x678] sm:$0xff]
      %v387 = vld [vmem:[%s0 + $0x680] sm:$0xff]
      %v388 = vld [vmem:[%s0 + $0x688] sm:$0xff]
      %v389 = vld [vmem:[%s0 + $0x690] sm:$0xff]
      %v390 = vld [vmem:[%s0 + $0x698] sm:$0xff]
      %v391 = vld [vmem:[%s0 + $0x6a0] sm:$0xff]
      %v392 = vld [vmem:[%s0 + $0x6a8] sm:$0xff]
      %v393 = vld [vmem:[%s0 + $0x6b0] sm:$0xff]
      %v394 = vld [vmem:[%s0 + $0x6b8] sm:$0xff]
      %v395 = vld [vmem:[%s0 + $0x6c0] sm:$0xff]
      %v396 = vld [vmem:[%s0 + $0x6c8] sm:$0xff]
      %v397 = vld [vmem:[%s0 + $0x6d0] sm:$0xff]
      %v398 = vld [vmem:[%s0 + $0x6d8] sm:$0xff]
      %v399 = vld [vmem:[%s0 + $0x6e0] sm:$0xff]
      %v400 = vld [vmem:[%s0 + $0x6e8] sm:$0xff]
      %v401 = vld [vmem:[%s0 + $0x6f0] sm:$0xff]
      %v402 = vld [vmem:[%s0 + $0x6f8] sm:$0xff]
      %v403 = vld [vmem:[%s0 + $0x700] sm:$0xff]
      %v404 = vld [vmem:[%s0 + $0x708] sm:$0xff]
      %v405 = vld [vmem:[%s0 + $0x710] sm:$0xff]
      %v406 = vld [vmem:[%s0 + $0x718] sm:$0xff]
      %v407 = vld [vmem:[%s0 + $0x720] sm:$0xff]
      %v408 = vld [vmem:[%s0 + $0x728] sm:$0xff]
      %v409 = vld [vmem:[%s0 + $0x730] sm:$0xff]
      %v410 = vld [vmem:[%s0 + $0x738] sm:$0xff]
      %v411 = vld [vmem:[%s0 + $0x740] sm:$0xff]
      %v412 = vld [vmem:[%s0 + $0x748] sm:$0xff]
      %v413 = vld [vmem:[%s0 + $0x750] sm:$0xff]
      %v414 = vld [vmem:[%s0 + $0x758] sm:$0xff]
      %v415 = vld [vmem:[%s0 + $0x760] sm:$0xff]
      %v416 = vld [vmem:[%s0 + $0x768] sm:$0xff]
      %v417 = vld [vmem:[%s0 + $0x770] sm:$0xff]
      %v418 = vld [vmem:[%s0 + $0x778] sm:$0xff]
      %v419 = vld [vmem:[%s0 + $0x780] sm:$0xff]
      %v420 = vld [vmem:[%s0 + $0x788] sm:$0xff]
      %v421 = vld [vmem:[%s0 + $0x790] sm:$0xff]
      %v422 = vld [vmem:[%s0 + $0x798] sm:$0xff]
      %v423 = vld [vmem:[%s0 + $0x7a0] sm:$0xff]
      %v424 = vld [vmem:[%s0 + $0x7a8] sm:$0xff]
      %v425 = vld [vmem:[%s0 + $0x7b0] sm:$0xff]
      %v426 = vld [vmem:[%s0 + $0x7b8] sm:$0xff]
      %v427 = vld [vmem:[%s0 + $0x7c0] sm:$0xff]
      %v428 = vld [vmem:[%s0 + $0x7c8] sm:$0xff]
      %v429 = vld [vmem:[%s0 + $0x7d0] sm:$0xff]
      %v430 = vld [vmem:[%s0 + $0x7d8] sm:$0xff]
      %v431 = vld [vmem:[%s0 + $0x7e0] sm:$0xff]
      %v432 = vld [vmem:[%s0 + $0x7e8] sm:$0xff]
      %v433 = vld [vmem:[%s0 + $0x7f0] sm:$0xff]
      %v434 = vld [vmem:[%s0 + $0x7f8] sm:$0xff]
      %v435 = vld [vmem:[%s1] sm:$0xff]
      %v436 = vld [vmem:[%s1 + $0x8] sm:$0xff]
      %v437 = vld [vmem:[%s1 + $0x10] sm:$0xff]
      %v438 = vld [vmem:[%s1 + $0x18] sm:$0xff]
      %v439 = vld [vmem:[%s1 + $0x20] sm:$0xff]
      %v440 = vld [vmem:[%s1 + $0x28] sm:$0xff]
      %v441 = vld [vmem:[%s1 + $0x30] sm:$0xff]
      %v442 = vld [vmem:[%s1 + $0x38] sm:$0xff]
      %v443 = vld [vmem:[%s1 + $0x40] sm:$0xff]
      %v444 = vld [vmem:[%s1 + $0x48] sm:$0xff]
      %v445 = vld [vmem:[%s1 + $0x50] sm:$0xff]
      %v446 = vld [vmem:[%s1 + $0x58] sm:$0xff]
      %v447 = vld [vmem:[%s1 + $0x60] sm:$0xff]
      %v448 = vld [vmem:[%s1 + $0x68] sm:$0xff]
      %v449 = vld [vmem:[%s1 + $0x70] sm:$0xff]
      %v450 = vld [vmem:[%s1 + $0x78] sm:$0xff]
      %v451 = vld [vmem:[%s1 + $0x80] sm:$0xff]
      %v452 = vld [vmem:[%s1 + $0x88] sm:$0xff]
      %v453 = vld [vmem:[%s1 + $0x90] sm:$0xff]
      %v454 = vld [vmem:[%s1 + $0x98] sm:$0xff]
      %v455 = vld [vmem:[%s1 + $0xa0] sm:$0xff]
      %v456 = vld [vmem:[%s1 + $0xa8] sm:$0xff]
      %v457 = vld [vmem:[%s1 + $0xb0] sm:$0xff]
      %v458 = vld [vmem:[%s1 + $0xb8] sm:$0xff]
      %v459 = vld [vmem:[%s1 + $0xc0] sm:$0xff]
      %v460 = vld [vmem:[%s1 + $0xc8] sm:$0xff]
      %v461 = vld [vmem:[%s1 + $0xd0] sm:$0xff]
      %v462 = vld [vmem:[%s1 + $0xd8] sm:$0xff]
      %v463 = vld [vmem:[%s1 + $0xe0] sm:$0xff]
      %v464 = vld [vmem:[%s1 + $0xe8] sm:$0xff]
      %v465 = vld [vmem:[%s1 + $0xf0] sm:$0xff]
      %v466 = vld [vmem:[%s1 + $0xf8] sm:$0xff]
      %v467 = vld [vmem:[%s1 + $0x100] sm:$0xff]
      %v468 = vld [vmem:[%s1 + $0x108] sm:$0xff]
      %v469 = vld [vmem:[%s1 + $0x110] sm:$0xff]
      %v470 = vld [vmem:[%s1 + $0x118] sm:$0xff]
      %v471 = vld [vmem:[%s1 + $0x120] sm:$0xff]
      %v472 = vld [vmem:[%s1 + $0x128] sm:$0xff]
      %v473 = vld [vmem:[%s1 + $0x130] sm:$0xff]
      %v474 = vld [vmem:[%s1 + $0x138] sm:$0xff]
      %v475 = vld [vmem:[%s1 + $0x140] sm:$0xff]
      %v476 = vld [vmem:[%s1 + $0x148] sm:$0xff]
      %v477 = vld [vmem:[%s1 + $0x150] sm:$0xff]
      %v478 = vld [vmem:[%s1 + $0x158] sm:$0xff]
      %v479 = vld [vmem:[%s1 + $0x160] sm:$0xff]
      %v480 = vld [vmem:[%s1 + $0x168] sm:$0xff]
      %v481 = vld [vmem:[%s1 + $0x170] sm:$0xff]
      %v482 = vld [vmem:[%s1 + $0x178] sm:$0xff]
      %v483 = vld [vmem:[%s1 + $0x180] sm:$0xff]
      %v484 = vld [vmem:[%s1 + $0x188] sm:$0xff]
      %v485 = vld [vmem:[%s1 + $0x190] sm:$0xff]
      %v486 = vld [vmem:[%s1 + $0x198] sm:$0xff]
      %v487 = vld [vmem:[%s1 + $0x1a0] sm:$0xff]
      %v488 = vld [vmem:[%s1 + $0x1a8] sm:$0xff]
      %v489 = vld [vmem:[%s1 + $0x1b0] sm:$0xff]
      %v490 = vld [vmem:[%s1 + $0x1b8] sm:$0xff]
      %v491 = vld [vmem:[%s1 + $0x1c0] sm:$0xff]
      %v492 = vld [vmem:[%s1 + $0x1c8] sm:$0xff]
      %v493 = vld [vmem:[%s1 + $0x1d0] sm:$0xff]
      %v494 = vld [vmem:[%s1 + $0x1d8] sm:$0xff]
      %v495 = vld [vmem:[%s1 + $0x1e0] sm:$0xff]
      %v496 = vld [vmem:[%s1 + $0x1e8] sm:$0xff]
      %v497 = vld [vmem:[%s1 + $0x1f0] sm:$0xff]
      %v498 = vld [vmem:[%s1 + $0x1f8] sm:$0xff]
      %v499 = vld [vmem:[%s1 + $0x200] sm:$0xff]
      %v500 = vld [vmem:[%s1 + $0x208] sm:$0xff]
      %v501 = vld [vmem:[%s1 + $0x210] sm:$0xff]
      %v502 = vld [vmem:[%s1 + $0x218] sm:$0xff]
      %v503 = vld [vmem:[%s1 + $0x220] sm:$0xff]
      %v504 = vld [vmem:[%s1 + $0x228] sm:$0xff]
      %v505 = vld [vmem:[%s1 + $0x230] sm:$0xff]
      %v506 = vld [vmem:[%s1 + $0x238] sm:$0xff]
      %v507 = vld [vmem:[%s1 + $0x240] sm:$0xff]
      %v508 = vld [vmem:[%s1 + $0x248] sm:$0xff]
      %v509 = vld [vmem:[%s1 + $0x250] sm:$0xff]
      %v510 = vld [vmem:[%s1 + $0x258] sm:$0xff]
      %v511 = vld [vmem:[%s1 + $0x260] sm:$0xff]
      %v512 = vld [vmem:[%s1 + $0x268] sm:$0xff]
      %v513 = vld [vmem:[%s1 + $0x270] sm:$0xff]
      %v514 = vld [vmem:[%s1 + $0x278] sm:$0xff]
      %v515 = vld [vmem:[%s1 + $0x280] sm:$0xff]
      %v516 = vld [vmem:[%s1 + $0x288] sm:$0xff]
      %v517 = vld [vmem:[%s1 + $0x290] sm:$0xff]
      %v518 = vld [vmem:[%s1 + $0x298] sm:$0xff]
      %v519 = vld [vmem:[%s1 + $0x2a0] sm:$0xff]
      %v520 = vld [vmem:[%s1 + $0x2a8] sm:$0xff]
      %v521 = vld [vmem:[%s1 + $0x2b0] sm:$0xff]
      %v522 = vld [vmem:[%s1 + $0x2b8] sm:$0xff]
      %v523 = vld [vmem:[%s1 + $0x2c0] sm:$0xff]
      %v524 = vld [vmem:[%s1 + $0x2c8] sm:$0xff]
      %v525 = vld [vmem:[%s1 + $0x2d0] sm:$0xff]
      %v526 = vld [vmem:[%s1 + $0x2d8] sm:$0xff]
      %v527 = vld [vmem:[%s1 + $0x2e0] sm:$0xff]
      %v528 = vld [vmem:[%s1 + $0x2e8] sm:$0xff]
      %v529 = vld [vmem:[%s1 + $0x2f0] sm:$0xff]
      %v530 = vld [vmem:[%s1 + $0x2f8] sm:$0xff]
      %v531 = vld [vmem:[%s1 + $0x300] sm:$0xff]
      %v532 = vld [vmem:[%s1 + $0x308] sm:$0xff]
      %v533 = vld [vmem:[%s1 + $0x310] sm:$0xff]
      %v534 = vld [vmem:[%s1 + $0x318] sm:$0xff]
      %v535 = vld [vmem:[%s1 + $0x320] sm:$0xff]
      %v536 = vld [vmem:[%s1 + $0x328] sm:$0xff]
      %v537 = vld [vmem:[%s1 + $0x330] sm:$0xff]
      %v538 = vld [vmem:[%s1 + $0x338] sm:$0xff]
      %v539 = vld [vmem:[%s1 + $0x340] sm:$0xff]
      %v540 = vld [vmem:[%s1 + $0x348] sm:$0xff]
      %v541 = vld [vmem:[%s1 + $0x350] sm:$0xff]
      %v542 = vld [vmem:[%s1 + $0x358] sm:$0xff]
      %v543 = vld [vmem:[%s1 + $0x360] sm:$0xff]
      %v544 = vld [vmem:[%s1 + $0x368] sm:$0xff]
      %v545 = vld [vmem:[%s1 + $0x370] sm:$0xff]
      %v546 = vld [vmem:[%s1 + $0x378] sm:$0xff]
      %v547 = vld [vmem:[%s1 + $0x380] sm:$0xff]
      %v548 = vld [vmem:[%s1 + $0x388] sm:$0xff]
      %v549 = vld [vmem:[%s1 + $0x390] sm:$0xff]
      %v550 = vld [vmem:[%s1 + $0x398] sm:$0xff]
      %v551 = vld [vmem:[%s1 + $0x3a0] sm:$0xff]
      %v552 = vld [vmem:[%s1 + $0x3a8] sm:$0xff]
      %v553 = vld [vmem:[%s1 + $0x3b0] sm:$0xff]
      %v554 = vld [vmem:[%s1 + $0x3b8] sm:$0xff]
      %v555 = vld [vmem:[%s1 + $0x3c0] sm:$0xff]
      %v556 = vld [vmem:[%s1 + $0x3c8] sm:$0xff]
      %v557 = vld [vmem:[%s1 + $0x3d0] sm:$0xff]
      %v558 = vld [vmem:[%s1 + $0x3d8] sm:$0xff]
      %v559 = vld [vmem:[%s1 + $0x3e0] sm:$0xff]
      %v560 = vld [vmem:[%s1 + $0x3e8] sm:$0xff]
      %v561 = vld [vmem:[%s1 + $0x3f0] sm:$0xff]
      %v562 = vld [vmem:[%s1 + $0x3f8] sm:$0xff]
      %v563 = vld [vmem:[%s1 + $0x400] sm:$0xff]
      %v564 = vld [vmem:[%s1 + $0x408] sm:$0xff]
      %v565 = vld [vmem:[%s1 + $0x410] sm:$0xff]
      %v566 = vld [vmem:[%s1 + $0x418] sm:$0xff]
      %v567 = vld [vmem:[%s1 + $0x420] sm:$0xff]
      %v568 = vld [vmem:[%s1 + $0x428] sm:$0xff]
      %v569 = vld [vmem:[%s1 + $0x430] sm:$0xff]
      %v570 = vld [vmem:[%s1 + $0x438] sm:$0xff]
      %v571 = vld [vmem:[%s1 + $0x440] sm:$0xff]
      %v572 = vld [vmem:[%s1 + $0x448] sm:$0xff]
      %v573 = vld [vmem:[%s1 + $0x450] sm:$0xff]
      %v574 = vld [vmem:[%s1 + $0x458] sm:$0xff]
      %v575 = vld [vmem:[%s1 + $0x460] sm:$0xff]
      %v576 = vld [vmem:[%s1 + $0x468] sm:$0xff]
      %v577 = vld [vmem:[%s1 + $0x470] sm:$0xff]
      %v578 = vld [vmem:[%s1 + $0x478] sm:$0xff]
      %v579 = vld [vmem:[%s1 + $0x480] sm:$0xff]
      %v580 = vld [vmem:[%s1 + $0x488] sm:$0xff]
      %v581 = vld [vmem:[%s1 + $0x490] sm:$0xff]
      %v582 = vld [vmem:[%s1 + $0x498] sm:$0xff]
      %v583 = vld [vmem:[%s1 + $0x4a0] sm:$0xff]
      %v584 = vld [vmem:[%s1 + $0x4a8] sm:$0xff]
      %v585 = vld [vmem:[%s1 + $0x4b0] sm:$0xff]
      %v586 = vld [vmem:[%s1 + $0x4b8] sm:$0xff]
      %v587 = vld [vmem:[%s1 + $0x4c0] sm:$0xff]
      %v588 = vld [vmem:[%s1 + $0x4c8] sm:$0xff]
      %v589 = vld [vmem:[%s1 + $0x4d0] sm:$0xff]
      %v590 = vld [vmem:[%s1 + $0x4d8] sm:$0xff]
      %v591 = vld [vmem:[%s1 + $0x4e0] sm:$0xff]
      %v592 = vld [vmem:[%s1 + $0x4e8] sm:$0xff]
      %v593 = vld [vmem:[%s1 + $0x4f0] sm:$0xff]
      %v594 = vld [vmem:[%s1 + $0x4f8] sm:$0xff]
      %v595 = vld [vmem:[%s1 + $0x500] sm:$0xff]
      %v596 = vld [vmem:[%s1 + $0x508] sm:$0xff]
      %v597 = vld [vmem:[%s1 + $0x510] sm:$0xff]
      %v598 = vld [vmem:[%s1 + $0x518] sm:$0xff]
      %v599 = vld [vmem:[%s1 + $0x520] sm:$0xff]
      %v600 = vld [vmem:[%s1 + $0x528] sm:$0xff]
      %v601 = vld [vmem:[%s1 + $0x530] sm:$0xff]
      %v602 = vld [vmem:[%s1 + $0x538] sm:$0xff]
      %v603 = vld [vmem:[%s1 + $0x540] sm:$0xff]
      %v604 = vld [vmem:[%s1 + $0x548] sm:$0xff]
      %v605 = vld [vmem:[%s1 + $0x550] sm:$0xff]
      %v606 = vld [vmem:[%s1 + $0x558] sm:$0xff]
      %v607 = vld [vmem:[%s1 + $0x560] sm:$0xff]
      %v608 = vld [vmem:[%s1 + $0x568] sm:$0xff]
      %v609 = vld [vmem:[%s1 + $0x570] sm:$0xff]
      %v610 = vld [vmem:[%s1 + $0x578] sm:$0xff]
      %v611 = vld [vmem:[%s1 + $0x580] sm:$0xff]
      %v612 = vld [vmem:[%s1 + $0x588] sm:$0xff]
      %v613 = vld [vmem:[%s1 + $0x590] sm:$0xff]
      %v614 = vld [vmem:[%s1 + $0x598] sm:$0xff]
      %v615 = vld [vmem:[%s1 + $0x5a0] sm:$0xff]
      %v616 = vld [vmem:[%s1 + $0x5a8] sm:$0xff]
      %v617 = vld [vmem:[%s1 + $0x5b0] sm:$0xff]
      %v618 = vld [vmem:[%s1 + $0x5b8] sm:$0xff]
      %v619 = vld [vmem:[%s1 + $0x5c0] sm:$0xff]
      %v620 = vld [vmem:[%s1 + $0x5c8] sm:$0xff]
      %v621 = vld [vmem:[%s1 + $0x5d0] sm:$0xff]
      %v622 = vld [vmem:[%s1 + $0x5d8] sm:$0xff]
      %v623 = vld [vmem:[%s1 + $0x5e0] sm:$0xff]
      %v624 = vld [vmem:[%s1 + $0x5e8] sm:$0xff]
      %v625 = vld [vmem:[%s1 + $0x5f0] sm:$0xff]
      %v626 = vld [vmem:[%s1 + $0x5f8] sm:$0xff]
      %v627 = vld [vmem:[%s1 + $0x600] sm:$0xff]
      %v628 = vld [vmem:[%s1 + $0x608] sm:$0xff]
      %v629 = vld [vmem:[%s1 + $0x610] sm:$0xff]
      %v630 = vld [vmem:[%s1 + $0x618] sm:$0xff]
      %v631 = vld [vmem:[%s1 + $0x620] sm:$0xff]
      %v632 = vld [vmem:[%s1 + $0x628] sm:$0xff]
      %v633 = vld [vmem:[%s1 + $0x630] sm:$0xff]
      %v634 = vld [vmem:[%s1 + $0x638] sm:$0xff]
      %v635 = vld [vmem:[%s1 + $0x640] sm:$0xff]
      %v636 = vld [vmem:[%s1 + $0x648] sm:$0xff]
      %v637 = vld [vmem:[%s1 + $0x650] sm:$0xff]
      %v638 = vld [vmem:[%s1 + $0x658] sm:$0xff]
      %v639 = vld [vmem:[%s1 + $0x660] sm:$0xff]
      %v640 = vld [vmem:[%s1 + $0x668] sm:$0xff]
      %v641 = vld [vmem:[%s1 + $0x670] sm:$0xff]
      %v642 = vld [vmem:[%s1 + $0x678] sm:$0xff]
      %v643 = vld [vmem:[%s1 + $0x680] sm:$0xff]
      %v644 = vld [vmem:[%s1 + $0x688] sm:$0xff]
      %v645 = vld [vmem:[%s1 + $0x690] sm:$0xff]
      %v646 = vld [vmem:[%s1 + $0x698] sm:$0xff]
      %v647 = vld [vmem:[%s1 + $0x6a0] sm:$0xff]
      %v648 = vld [vmem:[%s1 + $0x6a8] sm:$0xff]
      %v649 = vld [vmem:[%s1 + $0x6b0] sm:$0xff]
      %v650 = vld [vmem:[%s1 + $0x6b8] sm:$0xff]
      %v651 = vld [vmem:[%s1 + $0x6c0] sm:$0xff]
      %v652 = vld [vmem:[%s1 + $0x6c8] sm:$0xff]
      %v653 = vld [vmem:[%s1 + $0x6d0] sm:$0xff]
      %v654 = vld [vmem:[%s1 + $0x6d8] sm:$0xff]
      %v655 = vld [vmem:[%s1 + $0x6e0] sm:$0xff]
      %v656 = vld [vmem:[%s1 + $0x6e8] sm:$0xff]
      %v657 = vld [vmem:[%s1 + $0x6f0] sm:$0xff]
      %v658 = vld [vmem:[%s1 + $0x6f8] sm:$0xff]
      %v659 = vld [vmem:[%s1 + $0x700] sm:$0xff]
      %v660 = vld [vmem:[%s1 + $0x708] sm:$0xff]
      %v661 = vld [vmem:[%s1 + $0x710] sm:$0xff]
      %v662 = vld [vmem:[%s1 + $0x718] sm:$0xff]
      %v663 = vld [vmem:[%s1 + $0x720] sm:$0xff]
      %v664 = vld [vmem:[%s1 + $0x728] sm:$0xff]
      %v665 = vld [vmem:[%s1 + $0x730] sm:$0xff]
      %v666 = vld [vmem:[%s1 + $0x738] sm:$0xff]
      %v667 = vld [vmem:[%s1 + $0x740] sm:$0xff]
      %v668 = vld [vmem:[%s1 + $0x748] sm:$0xff]
      %v669 = vld [vmem:[%s1 + $0x750] sm:$0xff]
      %v670 = vld [vmem:[%s1 + $0x758] sm:$0xff]
      %v671 = vld [vmem:[%s1 + $0x760] sm:$0xff]
      %v672 = vld [vmem:[%s1 + $0x768] sm:$0xff]
      %v673 = vld [vmem:[%s1 + $0x770] sm:$0xff]
      %v674 = vld [vmem:[%s1 + $0x778] sm:$0xff]
      %v675 = vld [vmem:[%s1 + $0x780] sm:$0xff]
      %v676 = vld [vmem:[%s1 + $0x788] sm:$0xff]
      %v677 = vld [vmem:[%s1 + $0x790] sm:$0xff]
      %v678 = vld [vmem:[%s1 + $0x798] sm:$0xff]
      %v679 = vld [vmem:[%s1 + $0x7a0] sm:$0xff]
      %v680 = vld [vmem:[%s1 + $0x7a8] sm:$0xff]
      %v681 = vld [vmem:[%s1 + $0x7b0] sm:$0xff]
      %v682 = vld [vmem:[%s1 + $0x7b8] sm:$0xff]
      %v683 = vld [vmem:[%s1 + $0x7c0] sm:$0xff]
      %v684 = vld [vmem:[%s1 + $0x7c8] sm:$0xff]
      %v685 = vld [vmem:[%s1 + $0x7d0] sm:$0xff]
      %v686 = vld [vmem:[%s1 + $0x7d8] sm:$0xff]
      %v687 = vld [vmem:[%s1 + $0x7e0] sm:$0xff]
      %v688 = vld [vmem:[%s1 + $0x7e8] sm:$0xff]
      %v689 = vld [vmem:[%s1 + $0x7f0] sm:$0xff]
      %v690 = vld [vmem:[%s1 + $0x7f8] sm:$0xff]
      %v691 = vadd.f32 %v179, %v435
      %v692 = vadd.f32 %v180, %v436
      %v693 = vadd.f32 %v181, %v437
      %v694 = vadd.f32 %v182, %v438
      %v695 = vadd.f32 %v183, %v439
      %v696 = vadd.f32 %v184, %v440
      %v697 = vadd.f32 %v185, %v441
      %v698 = vadd.f32 %v186, %v442
      %v699 = vadd.f32 %v187, %v443
      %v700 = vadd.f32 %v188, %v444
      %v701 = vadd.f32 %v189, %v445
      %v702 = vadd.f32 %v190, %v446
      %v703 = vadd.f32 %v191, %v447
      %v704 = vadd.f32 %v192, %v448
      %v705 = vadd.f32 %v193, %v449
      %v706 = vadd.f32 %v194, %v450
      %v707 = vadd.f32 %v195, %v451
      %v708 = vadd.f32 %v196, %v452
      %v709 = vadd.f32 %v197, %v453
      %v710 = vadd.f32 %v198, %v454
      %v711 = vadd.f32 %v199, %v455
      %v712 = vadd.f32 %v200, %v456
      %v713 = vadd.f32 %v201, %v457
      %v714 = vadd.f32 %v202, %v458
      %v715 = vadd.f32 %v203, %v459
      %v716 = vadd.f32 %v204, %v460
      %v717 = vadd.f32 %v205, %v461
      %v718 = vadd.f32 %v206, %v462
      %v719 = vadd.f32 %v207, %v463
      %v720 = vadd.f32 %v208, %v464
      %v721 = vadd.f32 %v209, %v465
      %v722 = vadd.f32 %v210, %v466
      %v723 = vadd.f32 %v211, %v467
      %v724 = vadd.f32 %v212, %v468
      %v725 = vadd.f32 %v213, %v469
      %v726 = vadd.f32 %v214, %v470
      %v727 = vadd.f32 %v215, %v471
      %v728 = vadd.f32 %v216, %v472
      %v729 = vadd.f32 %v217, %v473
      %v730 = vadd.f32 %v218, %v474
      %v731 = vadd.f32 %v219, %v475
      %v732 = vadd.f32 %v220, %v476
      %v733 = vadd.f32 %v221, %v477
      %v734 = vadd.f32 %v222, %v478
      %v735 = vadd.f32 %v223, %v479
      %v736 = vadd.f32 %v224, %v480
      %v737 = vadd.f32 %v225, %v481
      %v738 = vadd.f32 %v226, %v482
      %v739 = vadd.f32 %v227, %v483
      %v740 = vadd.f32 %v228, %v484
      %v741 = vadd.f32 %v229, %v485
      %v742 = vadd.f32 %v230, %v486
      %v743 = vadd.f32 %v231, %v487
      %v744 = vadd.f32 %v232, %v488
      %v745 = vadd.f32 %v233, %v489
      %v746 = vadd.f32 %v234, %v490
      %v747 = vadd.f32 %v235, %v491
      %v748 = vadd.f32 %v236, %v492
      %v749 = vadd.f32 %v237, %v493
      %v750 = vadd.f32 %v238, %v494
      %v751 = vadd.f32 %v239, %v495
      %v752 = vadd.f32 %v240, %v496
      %v753 = vadd.f32 %v241, %v497
      %v754 = vadd.f32 %v242, %v498
      %v755 = vadd.f32 %v243, %v499
      %v756 = vadd.f32 %v244, %v500
      %v757 = vadd.f32 %v245, %v501
      %v758 = vadd.f32 %v246, %v502
      %v759 = vadd.f32 %v247, %v503
      %v760 = vadd.f32 %v248, %v504
      %v761 = vadd.f32 %v249, %v505
      %v762 = vadd.f32 %v250, %v506
      %v763 = vadd.f32 %v251, %v507
      %v764 = vadd.f32 %v252, %v508
      %v765 = vadd.f32 %v253, %v509
      %v766 = vadd.f32 %v254, %v510
      %v767 = vadd.f32 %v255, %v511
      %v768 = vadd.f32 %v256, %v512
      %v769 = vadd.f32 %v257, %v513
      %v770 = vadd.f32 %v258, %v514
      %v771 = vadd.f32 %v259, %v515
      %v772 = vadd.f32 %v260, %v516
      %v773 = vadd.f32 %v261, %v517
      %v774 = vadd.f32 %v262, %v518
      %v775 = vadd.f32 %v263, %v519
      %v776 = vadd.f32 %v264, %v520
      %v777 = vadd.f32 %v265, %v521
      %v778 = vadd.f32 %v266, %v522
      %v779 = vadd.f32 %v267, %v523
      %v780 = vadd.f32 %v268, %v524
      %v781 = vadd.f32 %v269, %v525
      %v782 = vadd.f32 %v270, %v526
      %v783 = vadd.f32 %v271, %v527
      %v784 = vadd.f32 %v272, %v528
      %v785 = vadd.f32 %v273, %v529
      %v786 = vadd.f32 %v274, %v530
      %v787 = vadd.f32 %v275, %v531
      %v788 = vadd.f32 %v276, %v532
      %v789 = vadd.f32 %v277, %v533
      %v790 = vadd.f32 %v278, %v534
      %v791 = vadd.f32 %v279, %v535
      %v792 = vadd.f32 %v280, %v536
      %v793 = vadd.f32 %v281, %v537
      %v794 = vadd.f32 %v282, %v538
      %v795 = vadd.f32 %v283, %v539
      %v796 = vadd.f32 %v284, %v540
      %v797 = vadd.f32 %v285, %v541
      %v798 = vadd.f32 %v286, %v542
      %v799 = vadd.f32 %v287, %v543
      %v800 = vadd.f32 %v288, %v544
      %v801 = vadd.f32 %v289, %v545
      %v802 = vadd.f32 %v290, %v546
      %v803 = vadd.f32 %v291, %v547
      %v804 = vadd.f32 %v292, %v548
      %v805 = vadd.f32 %v293, %v549
      %v806 = vadd.f32 %v294, %v550
      %v807 = vadd.f32 %v295, %v551
      %v808 = vadd.f32 %v296, %v552
      %v809 = vadd.f32 %v297, %v553
      %v810 = vadd.f32 %v298, %v554
      %v811 = vadd.f32 %v299, %v555
      %v812 = vadd.f32 %v300, %v556
      %v813 = vadd.f32 %v301, %v557
      %v814 = vadd.f32 %v302, %v558
      %v815 = vadd.f32 %v303, %v559
      %v816 = vadd.f32 %v304, %v560
      %v817 = vadd.f32 %v305, %v561
      %v818 = vadd.f32 %v306, %v562
      %v819 = vadd.f32 %v307, %v563
      %v820 = vadd.f32 %v308, %v564
      %v821 = vadd.f32 %v309, %v565
      %v822 = vadd.f32 %v310, %v566
      %v823 = vadd.f32 %v311, %v567
      %v824 = vadd.f32 %v312, %v568
      %v825 = vadd.f32 %v313, %v569
      %v826 = vadd.f32 %v314, %v570
      %v827 = vadd.f32 %v315, %v571
      %v828 = vadd.f32 %v316, %v572
      %v829 = vadd.f32 %v317, %v573
      %v830 = vadd.f32 %v318, %v574
      %v831 = vadd.f32 %v319, %v575
      %v832 = vadd.f32 %v320, %v576
      %v833 = vadd.f32 %v321, %v577
      %v834 = vadd.f32 %v322, %v578
      %v835 = vadd.f32 %v323, %v579
      %v836 = vadd.f32 %v324, %v580
      %v837 = vadd.f32 %v325, %v581
      %v838 = vadd.f32 %v326, %v582
      %v839 = vadd.f32 %v327, %v583
      %v840 = vadd.f32 %v328, %v584
      %v841 = vadd.f32 %v329, %v585
      %v842 = vadd.f32 %v330, %v586
      %v843 = vadd.f32 %v331, %v587
      %v844 = vadd.f32 %v332, %v588
      %v845 = vadd.f32 %v333, %v589
      %v846 = vadd.f32 %v334, %v590
      %v847 = vadd.f32 %v335, %v591
      %v848 = vadd.f32 %v336, %v592
      %v849 = vadd.f32 %v337, %v593
      %v850 = vadd.f32 %v338, %v594
      %v851 = vadd.f32 %v339, %v595
      %v852 = vadd.f32 %v340, %v596
      %v853 = vadd.f32 %v341, %v597
      %v854 = vadd.f32 %v342, %v598
      %v855 = vadd.f32 %v343, %v599
      %v856 = vadd.f32 %v344, %v600
      %v857 = vadd.f32 %v345, %v601
      %v858 = vadd.f32 %v346, %v602
      %v859 = vadd.f32 %v347, %v603
      %v860 = vadd.f32 %v348, %v604
      %v861 = vadd.f32 %v349, %v605
      %v862 = vadd.f32 %v350, %v606
      %v863 = vadd.f32 %v351, %v607
      %v864 = vadd.f32 %v352, %v608
      %v865 = vadd.f32 %v353, %v609
      %v866 = vadd.f32 %v354, %v610
      %v867 = vadd.f32 %v355, %v611
      %v868 = vadd.f32 %v356, %v612
      %v869 = vadd.f32 %v357, %v613
      %v870 = vadd.f32 %v358, %v614
      %v871 = vadd.f32 %v359, %v615
      %v872 = vadd.f32 %v360, %v616
      %v873 = vadd.f32 %v361, %v617
      %v874 = vadd.f32 %v362, %v618
      %v875 = vadd.f32 %v363, %v619
      %v876 = vadd.f32 %v364, %v620
      %v877 = vadd.f32 %v365, %v621
      %v878 = vadd.f32 %v366, %v622
      %v879 = vadd.f32 %v367, %v623
      %v880 = vadd.f32 %v368, %v624
      %v881 = vadd.f32 %v369, %v625
      %v882 = vadd.f32 %v370, %v626
      %v883 = vadd.f32 %v371, %v627
      %v884 = vadd.f32 %v372, %v628
      %v885 = vadd.f32 %v373, %v629
      %v886 = vadd.f32 %v374, %v630
      %v887 = vadd.f32 %v375, %v631
      %v888 = vadd.f32 %v376, %v632
      %v889 = vadd.f32 %v377, %v633
      %v890 = vadd.f32 %v378, %v634
      %v891 = vadd.f32 %v379, %v635
      %v892 = vadd.f32 %v380, %v636
      %v893 = vadd.f32 %v381, %v637
      %v894 = vadd.f32 %v382, %v638
      %v895 = vadd.f32 %v383, %v639
      %v896 = vadd.f32 %v384, %v640
      %v897 = vadd.f32 %v385, %v641
      %v898 = vadd.f32 %v386, %v642
      %v899 = vadd.f32 %v387, %v643
      %v900 = vadd.f32 %v388, %v644
      %v901 = vadd.f32 %v389, %v645
      %v902 = vadd.f32 %v390, %v646
      %v903 = vadd.f32 %v391, %v647
      %v904 = vadd.f32 %v392, %v648
      %v905 = vadd.f32 %v393, %v649
      %v906 = vadd.f32 %v394, %v650
      %v907 = vadd.f32 %v395, %v651
      %v908 = vadd.f32 %v396, %v652
      %v909 = vadd.f32 %v397, %v653
      %v910 = vadd.f32 %v398, %v654
      %v911 = vadd.f32 %v399, %v655
      %v912 = vadd.f32 %v400, %v656
      %v913 = vadd.f32 %v401, %v657
      %v914 = vadd.f32 %v402, %v658
      %v915 = vadd.f32 %v403, %v659
      %v916 = vadd.f32 %v404, %v660
      %v917 = vadd.f32 %v405, %v661
      %v918 = vadd.f32 %v406, %v662
      %v919 = vadd.f32 %v407, %v663
      %v920 = vadd.f32 %v408, %v664
      %v921 = vadd.f32 %v409, %v665
      %v922 = vadd.f32 %v410, %v666
      %v923 = vadd.f32 %v411, %v667
      %v924 = vadd.f32 %v412, %v668
      %v925 = vadd.f32 %v413, %v669
      %v926 = vadd.f32 %v414, %v670
      %v927 = vadd.f32 %v415, %v671
      %v928 = vadd.f32 %v416, %v672
      %v929 = vadd.f32 %v417, %v673
      %v930 = vadd.f32 %v418, %v674
      %v931 = vadd.f32 %v419, %v675
      %v932 = vadd.f32 %v420, %v676
      %v933 = vadd.f32 %v421, %v677
      %v934 = vadd.f32 %v422, %v678
      %v935 = vadd.f32 %v423, %v679
      %v936 = vadd.f32 %v424, %v680
      %v937 = vadd.f32 %v425, %v681
      %v938 = vadd.f32 %v426, %v682
      %v939 = vadd.f32 %v427, %v683
      %v940 = vadd.f32 %v428, %v684
      %v941 = vadd.f32 %v429, %v685
      %v942 = vadd.f32 %v430, %v686
      %v943 = vadd.f32 %v431, %v687
      %v944 = vadd.f32 %v432, %v688
      %v945 = vadd.f32 %v433, %v689
      %v946 = vadd.f32 %v434, %v690
      %v947 = vmax.f32 %v691, 0.0
      %v948 = vmax.f32 %v692, 0.0
      %v949 = vmax.f32 %v693, 0.0
      %v950 = vmax.f32 %v694, 0.0
      %v951 = vmax.f32 %v695, 0.0
      %v952 = vmax.f32 %v696, 0.0
      %v953 = vmax.f32 %v697, 0.0
      %v954 = vmax.f32 %v698, 0.0
      %v955 = vmax.f32 %v699, 0.0
      %v956 = vmax.f32 %v700, 0.0
      %v957 = vmax.f32 %v701, 0.0
      %v958 = vmax.f32 %v702, 0.0
      %v959 = vmax.f32 %v703, 0.0
      %v960 = vmax.f32 %v704, 0.0
      %v961 = vmax.f32 %v705, 0.0
      %v962 = vmax.f32 %v706, 0.0
      %v963 = vmax.f32 %v707, 0.0
      %v964 = vmax.f32 %v708, 0.0
      %v965 = vmax.f32 %v709, 0.0
      %v966 = vmax.f32 %v710, 0.0
      %v967 = vmax.f32 %v711, 0.0
      %v968 = vmax.f32 %v712, 0.0
      %v969 = vmax.f32 %v713, 0.0
      %v970 = vmax.f32 %v714, 0.0
      %v971 = vmax.f32 %v715, 0.0
      %v972 = vmax.f32 %v716, 0.0
      %v973 = vmax.f32 %v717, 0.0
      %v974 = vmax.f32 %v718, 0.0
      %v975 = vmax.f32 %v719, 0.0
      %v976 = vmax.f32 %v720, 0.0
      %v977 = vmax.f32 %v721, 0.0
      %v978 = vmax.f32 %v722, 0.0
      %v979 = vmax.f32 %v723, 0.0
      %v980 = vmax.f32 %v724, 0.0
      %v981 = vmax.f32 %v725, 0.0
      %v982 = vmax.f32 %v726, 0.0
      %v983 = vmax.f32 %v727, 0.0
      %v984 = vmax.f32 %v728, 0.0
      %v985 = vmax.f32 %v729, 0.0
      %v986 = vmax.f32 %v730, 0.0
      %v987 = vmax.f32 %v731, 0.0
      %v988 = vmax.f32 %v732, 0.0
      %v989 = vmax.f32 %v733, 0.0
      %v990 = vmax.f32 %v734, 0.0
      %v991 = vmax.f32 %v735, 0.0
      %v992 = vmax.f32 %v736, 0.0
      %v993 = vmax.f32 %v737, 0.0
      %v994 = vmax.f32 %v738, 0.0
      %v995 = vmax.f32 %v739, 0.0
      %v996 = vmax.f32 %v740, 0.0
      %v997 = vmax.f32 %v741, 0.0
      %v998 = vmax.f32 %v742, 0.0
      %v999 = vmax.f32 %v743, 0.0
      %v1000 = vmax.f32 %v744, 0.0
      %v1001 = vmax.f32 %v745, 0.0
      %v1002 = vmax.f32 %v746, 0.0
      %v1003 = vmax.f32 %v747, 0.0
      %v1004 = vmax.f32 %v748, 0.0
      %v1005 = vmax.f32 %v749, 0.0
      %v1006 = vmax.f32 %v750, 0.0
      %v1007 = vmax.f32 %v751, 0.0
      %v1008 = vmax.f32 %v752, 0.0
      %v1009 = vmax.f32 %v753, 0.0
      %v1010 = vmax.f32 %v754, 0.0
      %v1011 = vmax.f32 %v755, 0.0
      %v1012 = vmax.f32 %v756, 0.0
      %v1013 = vmax.f32 %v757, 0.0
      %v1014 = vmax.f32 %v758, 0.0
      %v1015 = vmax.f32 %v759, 0.0
      %v1016 = vmax.f32 %v760, 0.0
      %v1017 = vmax.f32 %v761, 0.0
      %v1018 = vmax.f32 %v762, 0.0
      %v1019 = vmax.f32 %v763, 0.0
      %v1020 = vmax.f32 %v764, 0.0
      %v1021 = vmax.f32 %v765, 0.0
      %v1022 = vmax.f32 %v766, 0.0
      %v1023 = vmax.f32 %v767, 0.0
      %v1024 = vmax.f32 %v768, 0.0
      %v1025 = vmax.f32 %v769, 0.0
      %v1026 = vmax.f32 %v770, 0.0
      %v1027 = vmax.f32 %v771, 0.0
      %v1028 = vmax.f32 %v772, 0.0
      %v1029 = vmax.f32 %v773, 0.0
      %v1030 = vmax.f32 %v774, 0.0
      %v1031 = vmax.f32 %v775, 0.0
      %v1032 = vmax.f32 %v776, 0.0
      %v1033 = vmax.f32 %v777, 0.0
      %v1034 = vmax.f32 %v778, 0.0
      %v1035 = vmax.f32 %v779, 0.0
      %v1036 = vmax.f32 %v780, 0.0
      %v1037 = vmax.f32 %v781, 0.0
      %v1038 = vmax.f32 %v782, 0.0
      %v1039 = vmax.f32 %v783, 0.0
      %v1040 = vmax.f32 %v784, 0.0
      %v1041 = vmax.f32 %v785, 0.0
      %v1042 = vmax.f32 %v786, 0.0
      %v1043 = vmax.f32 %v787, 0.0
      %v1044 = vmax.f32 %v788, 0.0
      %v1045 = vmax.f32 %v789, 0.0
      %v1046 = vmax.f32 %v790, 0.0
      %v1047 = vmax.f32 %v791, 0.0
      %v1048 = vmax.f32 %v792, 0.0
      %v1049 = vmax.f32 %v793, 0.0
      %v1050 = vmax.f32 %v794, 0.0
      %v1051 = vmax.f32 %v795, 0.0
      %v1052 = vmax.f32 %v796, 0.0
      %v1053 = vmax.f32 %v797, 0.0
      %v1054 = vmax.f32 %v798, 0.0
      %v1055 = vmax.f32 %v799, 0.0
      %v1056 = vmax.f32 %v800, 0.0
      %v1057 = vmax.f32 %v801, 0.0
      %v1058 = vmax.f32 %v802, 0.0
      %v1059 = vmax.f32 %v803, 0.0
      %v1060 = vmax.f32 %v804, 0.0
      %v1061 = vmax.f32 %v805, 0.0
      %v1062 = vmax.f32 %v806, 0.0
      %v1063 = vmax.f32 %v807, 0.0
      %v1064 = vmax.f32 %v808, 0.0
      %v1065 = vmax.f32 %v809, 0.0
      %v1066 = vmax.f32 %v810, 0.0
      %v1067 = vmax.f32 %v811, 0.0
      %v1068 = vmax.f32 %v812, 0.0
      %v1069 = vmax.f32 %v813, 0.0
      %v1070 = vmax.f32 %v814, 0.0
      %v1071 = vmax.f32 %v815, 0.0
      %v1072 = vmax.f32 %v816, 0.0
      %v1073 = vmax.f32 %v817, 0.0
      %v1074 = vmax.f32 %v818, 0.0
      %v1075 = vmax.f32 %v819, 0.0
      %v1076 = vmax.f32 %v820, 0.0
      %v1077 = vmax.f32 %v821, 0.0
      %v1078 = vmax.f32 %v822, 0.0
      %v1079 = vmax.f32 %v823, 0.0
      %v1080 = vmax.f32 %v824, 0.0
      %v1081 = vmax.f32 %v825, 0.0
      %v1082 = vmax.f32 %v826, 0.0
      %v1083 = vmax.f32 %v827, 0.0
      %v1084 = vmax.f32 %v828, 0.0
      %v1085 = vmax.f32 %v829, 0.0
      %v1086 = vmax.f32 %v830, 0.0
      %v1087 = vmax.f32 %v831, 0.0
      %v1088 = vmax.f32 %v832, 0.0
      %v1089 = vmax.f32 %v833, 0.0
      %v1090 = vmax.f32 %v834, 0.0
      %v1091 = vmax.f32 %v835, 0.0
      %v1092 = vmax.f32 %v836, 0.0
      %v1093 = vmax.f32 %v837, 0.0
      %v1094 = vmax.f32 %v838, 0.0
      %v1095 = vmax.f32 %v839, 0.0
      %v1096 = vmax.f32 %v840, 0.0
      %v1097 = vmax.f32 %v841, 0.0
      %v1098 = vmax.f32 %v842, 0.0
      %v1099 = vmax.f32 %v843, 0.0
      %v1100 = vmax.f32 %v844, 0.0
      %v1101 = vmax.f32 %v845, 0.0
      %v1102 = vmax.f32 %v846, 0.0
      %v1103 = vmax.f32 %v847, 0.0
      %v1104 = vmax.f32 %v848, 0.0
      %v1105 = vmax.f32 %v849, 0.0
      %v1106 = vmax.f32 %v850, 0.0
      %v1107 = vmax.f32 %v851, 0.0
      %v1108 = vmax.f32 %v852, 0.0
      %v1109 = vmax.f32 %v853, 0.0
      %v1110 = vmax.f32 %v854, 0.0
      %v1111 = vmax.f32 %v855, 0.0
      %v1112 = vmax.f32 %v856, 0.0
      %v1113 = vmax.f32 %v857, 0.0
      %v1114 = vmax.f32 %v858, 0.0
      %v1115 = vmax.f32 %v859, 0.0
      %v1116 = vmax.f32 %v860, 0.0
      %v1117 = vmax.f32 %v861, 0.0
      %v1118 = vmax.f32 %v862, 0.0
      %v1119 = vmax.f32 %v863, 0.0
      %v1120 = vmax.f32 %v864, 0.0
      %v1121 = vmax.f32 %v865, 0.0
      %v1122 = vmax.f32 %v866, 0.0
      %v1123 = vmax.f32 %v867, 0.0
      %v1124 = vmax.f32 %v868, 0.0
      %v1125 = vmax.f32 %v869, 0.0
      %v1126 = vmax.f32 %v870, 0.0
      %v1127 = vmax.f32 %v871, 0.0
      %v1128 = vmax.f32 %v872, 0.0
      %v1129 = vmax.f32 %v873, 0.0
      %v1130 = vmax.f32 %v874, 0.0
      %v1131 = vmax.f32 %v875, 0.0
      %v1132 = vmax.f32 %v876, 0.0
      %v1133 = vmax.f32 %v877, 0.0
      %v1134 = vmax.f32 %v878, 0.0
      %v1135 = vmax.f32 %v879, 0.0
      %v1136 = vmax.f32 %v880, 0.0
      %v1137 = vmax.f32 %v881, 0.0
      %v1138 = vmax.f32 %v882, 0.0
      %v1139 = vmax.f32 %v883, 0.0
      %v1140 = vmax.f32 %v884, 0.0
      %v1141 = vmax.f32 %v885, 0.0
      %v1142 = vmax.f32 %v886, 0.0
      %v1143 = vmax.f32 %v887, 0.0
      %v1144 = vmax.f32 %v888, 0.0
      %v1145 = vmax.f32 %v889, 0.0
      %v1146 = vmax.f32 %v890, 0.0
      %v1147 = vmax.f32 %v891, 0.0
      %v1148 = vmax.f32 %v892, 0.0
      %v1149 = vmax.f32 %v893, 0.0
      %v1150 = vmax.f32 %v894, 0.0
      %v1151 = vmax.f32 %v895, 0.0
      %v1152 = vmax.f32 %v896, 0.0
      %v1153 = vmax.f32 %v897, 0.0
      %v1154 = vmax.f32 %v898, 0.0
      %v1155 = vmax.f32 %v899, 0.0
      %v1156 = vmax.f32 %v900, 0.0
      %v1157 = vmax.f32 %v901, 0.0
      %v1158 = vmax.f32 %v902, 0.0
      %v1159 = vmax.f32 %v903, 0.0
      %v1160 = vmax.f32 %v904, 0.0
      %v1161 = vmax.f32 %v905, 0.0
      %v1162 = vmax.f32 %v906, 0.0
      %v1163 = vmax.f32 %v907, 0.0
      %v1164 = vmax.f32 %v908, 0.0
      %v1165 = vmax.f32 %v909, 0.0
      %v1166 = vmax.f32 %v910, 0.0
      %v1167 = vmax.f32 %v911, 0.0
      %v1168 = vmax.f32 %v912, 0.0
      %v1169 = vmax.f32 %v913, 0.0
      %v1170 = vmax.f32 %v914, 0.0
      %v1171 = vmax.f32 %v915, 0.0
      %v1172 = vmax.f32 %v916, 0.0
      %v1173 = vmax.f32 %v917, 0.0
      %v1174 = vmax.f32 %v918, 0.0
      %v1175 = vmax.f32 %v919, 0.0
      %v1176 = vmax.f32 %v920, 0.0
      %v1177 = vmax.f32 %v921, 0.0
      %v1178 = vmax.f32 %v922, 0.0
      %v1179 = vmax.f32 %v923, 0.0
      %v1180 = vmax.f32 %v924, 0.0
      %v1181 = vmax.f32 %v925, 0.0
      %v1182 = vmax.f32 %v926, 0.0
      %v1183 = vmax.f32 %v927, 0.0
      %v1184 = vmax.f32 %v928, 0.0
      %v1185 = vmax.f32 %v929, 0.0
      %v1186 = vmax.f32 %v930, 0.0
      %v1187 = vmax.f32 %v931, 0.0
      %v1188 = vmax.f32 %v932, 0.0
      %v1189 = vmax.f32 %v933, 0.0
      %v1190 = vmax.f32 %v934, 0.0
      %v1191 = vmax.f32 %v935, 0.0
      %v1192 = vmax.f32 %v936, 0.0
      %v1193 = vmax.f32 %v937, 0.0
      %v1194 = vmax.f32 %v938, 0.0
      %v1195 = vmax.f32 %v939, 0.0
      %v1196 = vmax.f32 %v940, 0.0
      %v1197 = vmax.f32 %v941, 0.0
      %v1198 = vmax.f32 %v942, 0.0
      %v1199 = vmax.f32 %v943, 0.0
      %v1200 = vmax.f32 %v944, 0.0
      %v1201 = vmax.f32 %v945, 0.0
      %v1202 = vmax.f32 %v946, 0.0
      %v1203 = vpack.c.bf16 %v949, %v947
      %v1204 = vpack.c.bf16 %v950, %v948
      %v1205 = vpack.c.bf16 %v953, %v951
      %v1206 = vpack.c.bf16 %v954, %v952
      %v1207 = vpack.c.bf16 %v957, %v955
      %v1208 = vpack.c.bf16 %v958, %v956
      %v1209 = vpack.c.bf16 %v961, %v959
      %v1210 = vpack.c.bf16 %v962, %v960
      %v1211 = vpack.c.bf16 %v965, %v963
      %v1212 = vpack.c.bf16 %v966, %v964
      %v1213 = vpack.c.bf16 %v969, %v967
      %v1214 = vpack.c.bf16 %v970, %v968
      %v1215 = vpack.c.bf16 %v973, %v971
      %v1216 = vpack.c.bf16 %v974, %v972
      %v1217 = vpack.c.bf16 %v977, %v975
      %v1218 = vpack.c.bf16 %v978, %v976
      %v1219 = vpack.c.bf16 %v981, %v979
      %v1220 = vpack.c.bf16 %v982, %v980
      %v1221 = vpack.c.bf16 %v985, %v983
      %v1222 = vpack.c.bf16 %v986, %v984
      %v1223 = vpack.c.bf16 %v989, %v987
      %v1224 = vpack.c.bf16 %v990, %v988
      %v1225 = vpack.c.bf16 %v993, %v991
      %v1226 = vpack.c.bf16 %v994, %v992
      %v1227 = vpack.c.bf16 %v997, %v995
      %v1228 = vpack.c.bf16 %v998, %v996
      %v1229 = vpack.c.bf16 %v1001, %v999
      %v1230 = vpack.c.bf16 %v1002, %v1000
      %v1231 = vpack.c.bf16 %v1005, %v1003
      %v1232 = vpack.c.bf16 %v1006, %v1004
      %v1233 = vpack.c.bf16 %v1009, %v1007
      %v1234 = vpack.c.bf16 %v1010, %v1008
      %v1235 = vpack.c.bf16 %v1013, %v1011
      %v1236 = vpack.c.bf16 %v1014, %v1012
      %v1237 = vpack.c.bf16 %v1017, %v1015
      %v1238 = vpack.c.bf16 %v1018, %v1016
      %v1239 = vpack.c.bf16 %v1021, %v1019
      %v1240 = vpack.c.bf16 %v1022, %v1020
      %v1241 = vpack.c.bf16 %v1025, %v1023
      %v1242 = vpack.c.bf16 %v1026, %v1024
      %v1243 = vpack.c.bf16 %v1029, %v1027
      %v1244 = vpack.c.bf16 %v1030, %v1028
      %v1245 = vpack.c.bf16 %v1033, %v1031
      %v1246 = vpack.c.bf16 %v1034, %v1032
      %v1247 = vpack.c.bf16 %v1037, %v1035
      %v1248 = vpack.c.bf16 %v1038, %v1036
      %v1249 = vpack.c.bf16 %v1041, %v1039
      %v1250 = vpack.c.bf16 %v1042, %v1040
      %v1251 = vpack.c.bf16 %v1045, %v1043
      %v1252 = vpack.c.bf16 %v1046, %v1044
      %v1253 = vpack.c.bf16 %v1049, %v1047
      %v1254 = vpack.c.bf16 %v1050, %v1048
      %v1255 = vpack.c.bf16 %v1053, %v1051
      %v1256 = vpack.c.bf16 %v1054, %v1052
      %v1257 = vpack.c.bf16 %v1057, %v1055
      %v1258 = vpack.c.bf16 %v1058, %v1056
      %v1259 = vpack.c.bf16 %v1061, %v1059
      %v1260 = vpack.c.bf16 %v1062, %v1060
      %v1261 = vpack.c.bf16 %v1065, %v1063
      %v1262 = vpack.c.bf16 %v1066, %v1064
      %v1263 = vpack.c.bf16 %v1069, %v1067
      %v1264 = vpack.c.bf16 %v1070, %v1068
      %v1265 = vpack.c.bf16 %v1073, %v1071
      %v1266 = vpack.c.bf16 %v1074, %v1072
      %v1267 = vpack.c.bf16 %v1077, %v1075
      %v1268 = vpack.c.bf16 %v1078, %v1076
      %v1269 = vpack.c.bf16 %v1081, %v1079
      %v1270 = vpack.c.bf16 %v1082, %v1080
      %v1271 = vpack.c.bf16 %v1085, %v1083
      %v1272 = vpack.c.bf16 %v1086, %v1084
      %v1273 = vpack.c.bf16 %v1089, %v1087
      %v1274 = vpack.c.bf16 %v1090, %v1088
      %v1275 = vpack.c.bf16 %v1093, %v1091
      %v1276 = vpack.c.bf16 %v1094, %v1092
      %v1277 = vpack.c.bf16 %v1097, %v1095
      %v1278 = vpack.c.bf16 %v1098, %v1096
      %v1279 = vpack.c.bf16 %v1101, %v1099
      %v1280 = vpack.c.bf16 %v1102, %v1100
      %v1281 = vpack.c.bf16 %v1105, %v1103
      %v1282 = vpack.c.bf16 %v1106, %v1104
      %v1283 = vpack.c.bf16 %v1109, %v1107
      %v1284 = vpack.c.bf16 %v1110, %v1108
      %v1285 = vpack.c.bf16 %v1113, %v1111
      %v1286 = vpack.c.bf16 %v1114, %v1112
      %v1287 = vpack.c.bf16 %v1117, %v1115
      %v1288 = vpack.c.bf16 %v1118, %v1116
      %v1289 = vpack.c.bf16 %v1121, %v1119
      %v1290 = vpack.c.bf16 %v1122, %v1120
      %v1291 = vpack.c.bf16 %v1125, %v1123
      %v1292 = vpack.c.bf16 %v1126, %v1124
      %v1293 = vpack.c.bf16 %v1129, %v1127
      %v1294 = vpack.c.bf16 %v1130, %v1128
      %v1295 = vpack.c.bf16 %v1133, %v1131
      %v1296 = vpack.c.bf16 %v1134, %v1132
      %v1297 = vpack.c.bf16 %v1137, %v1135
      %v1298 = vpack.c.bf16 %v1138, %v1136
      %v1299 = vpack.c.bf16 %v1141, %v1139
      %v1300 = vpack.c.bf16 %v1142, %v1140
      %v1301 = vpack.c.bf16 %v1145, %v1143
      %v1302 = vpack.c.bf16 %v1146, %v1144
      %v1303 = vpack.c.bf16 %v1149, %v1147
      %v1304 = vpack.c.bf16 %v1150, %v1148
      %v1305 = vpack.c.bf16 %v1153, %v1151
      %v1306 = vpack.c.bf16 %v1154, %v1152
      %v1307 = vpack.c.bf16 %v1157, %v1155
      %v1308 = vpack.c.bf16 %v1158, %v1156
      %v1309 = vpack.c.bf16 %v1161, %v1159
      %v1310 = vpack.c.bf16 %v1162, %v1160
      %v1311 = vpack.c.bf16 %v1165, %v1163
      %v1312 = vpack.c.bf16 %v1166, %v1164
      %v1313 = vpack.c.bf16 %v1169, %v1167
      %v1314 = vpack.c.bf16 %v1170, %v1168
      %v1315 = vpack.c.bf16 %v1173, %v1171
      %v1316 = vpack.c.bf16 %v1174, %v1172
      %v1317 = vpack.c.bf16 %v1177, %v1175
      %v1318 = vpack.c.bf16 %v1178, %v1176
      %v1319 = vpack.c.bf16 %v1181, %v1179
      %v1320 = vpack.c.bf16 %v1182, %v1180
      %v1321 = vpack.c.bf16 %v1185, %v1183
      %v1322 = vpack.c.bf16 %v1186, %v1184
      %v1323 = vpack.c.bf16 %v1189, %v1187
      %v1324 = vpack.c.bf16 %v1190, %v1188
      %v1325 = vpack.c.bf16 %v1193, %v1191
      %v1326 = vpack.c.bf16 %v1194, %v1192
      %v1327 = vpack.c.bf16 %v1197, %v1195
      %v1328 = vpack.c.bf16 %v1198, %v1196
      %v1329 = vpack.c.bf16 %v1201, %v1199
      %v1330 = vpack.c.bf16 %v1202, %v1200
      %v1331 = vld [vmem:[%s170] sm:$0xff]
      %v1332 = vld [vmem:[%s170 + $0x8] sm:$0xff]
      %v1333 = vld [vmem:[%s170 + $0x10] sm:$0xff]
      %v1334 = vld [vmem:[%s170 + $0x18] sm:$0xff]
      %v1335 = vld [vmem:[%s170 + $0x20] sm:$0xff]
      %v1336 = vld [vmem:[%s170 + $0x28] sm:$0xff]
      %v1337 = vld [vmem:[%s170 + $0x30] sm:$0xff]
      %v1338 = vld [vmem:[%s170 + $0x38] sm:$0xff]
      %v1339 = vld [vmem:[%s170 + $0x40] sm:$0xff]
      %v1340 = vld [vmem:[%s170 + $0x48] sm:$0xff]
      %v1341 = vld [vmem:[%s170 + $0x50] sm:$0xff]
      %v1342 = vld [vmem:[%s170 + $0x58] sm:$0xff]
      %v1343 = vld [vmem:[%s170 + $0x60] sm:$0xff]
      %v1344 = vld [vmem:[%s170 + $0x68] sm:$0xff]
      %v1345 = vld [vmem:[%s170 + $0x70] sm:$0xff]
      %v1346 = vld [vmem:[%s170 + $0x78] sm:$0xff]
      %v1347 = vld [vmem:[%s170 + $0x80] sm:$0xff]
      %v1348 = vld [vmem:[%s170 + $0x88] sm:$0xff]
      %v1349 = vld [vmem:[%s170 + $0x90] sm:$0xff]
      %v1350 = vld [vmem:[%s170 + $0x98] sm:$0xff]
      %v1351 = vld [vmem:[%s170 + $0xa0] sm:$0xff]
      %v1352 = vld [vmem:[%s170 + $0xa8] sm:$0xff]
      %v1353 = vld [vmem:[%s170 + $0xb0] sm:$0xff]
      %v1354 = vld [vmem:[%s170 + $0xb8] sm:$0xff]
      %v1355 = vld [vmem:[%s170 + $0xc0] sm:$0xff]
      %v1356 = vld [vmem:[%s170 + $0xc8] sm:$0xff]
      %v1357 = vld [vmem:[%s170 + $0xd0] sm:$0xff]
      %v1358 = vld [vmem:[%s170 + $0xd8] sm:$0xff]
      %v1359 = vld [vmem:[%s170 + $0xe0] sm:$0xff]
      %v1360 = vld [vmem:[%s170 + $0xe8] sm:$0xff]
      %v1361 = vld [vmem:[%s170 + $0xf0] sm:$0xff]
      %v1362 = vld [vmem:[%s170 + $0xf8] sm:$0xff]
      %v1363 = vld [vmem:[%s170 + $0x100] sm:$0xff]
      %v1364 = vld [vmem:[%s170 + $0x108] sm:$0xff]
      %v1365 = vld [vmem:[%s170 + $0x110] sm:$0xff]
      %v1366 = vld [vmem:[%s170 + $0x118] sm:$0xff]
      %v1367 = vld [vmem:[%s170 + $0x120] sm:$0xff]
      %v1368 = vld [vmem:[%s170 + $0x128] sm:$0xff]
      %v1369 = vld [vmem:[%s170 + $0x130] sm:$0xff]
      %v1370 = vld [vmem:[%s170 + $0x138] sm:$0xff]
      %v1371 = vld [vmem:[%s170 + $0x140] sm:$0xff]
      %v1372 = vld [vmem:[%s170 + $0x148] sm:$0xff]
      %v1373 = vld [vmem:[%s170 + $0x150] sm:$0xff]
      %v1374 = vld [vmem:[%s170 + $0x158] sm:$0xff]
      %v1375 = vld [vmem:[%s170 + $0x160] sm:$0xff]
      %v1376 = vld [vmem:[%s170 + $0x168] sm:$0xff]
      %v1377 = vld [vmem:[%s170 + $0x170] sm:$0xff]
      %v1378 = vld [vmem:[%s170 + $0x178] sm:$0xff]
      %v1379 = vld [vmem:[%s170 + $0x180] sm:$0xff]
      %v1380 = vld [vmem:[%s170 + $0x188] sm:$0xff]
      %v1381 = vld [vmem:[%s170 + $0x190] sm:$0xff]
      %v1382 = vld [vmem:[%s170 + $0x198] sm:$0xff]
      %v1383 = vld [vmem:[%s170 + $0x1a0] sm:$0xff]
      %v1384 = vld [vmem:[%s170 + $0x1a8] sm:$0xff]
      %v1385 = vld [vmem:[%s170 + $0x1b0] sm:$0xff]
      %v1386 = vld [vmem:[%s170 + $0x1b8] sm:$0xff]
      %v1387 = vld [vmem:[%s170 + $0x1c0] sm:$0xff]
      %v1388 = vld [vmem:[%s170 + $0x1c8] sm:$0xff]
      %v1389 = vld [vmem:[%s170 + $0x1d0] sm:$0xff]
      %v1390 = vld [vmem:[%s170 + $0x1d8] sm:$0xff]
      %v1391 = vld [vmem:[%s170 + $0x1e0] sm:$0xff]
      %v1392 = vld [vmem:[%s170 + $0x1e8] sm:$0xff]
      %v1393 = vld [vmem:[%s170 + $0x1f0] sm:$0xff]
      %v1394 = vld [vmem:[%s170 + $0x1f8] sm:$0xff]
      %v1459 = vunpack.c.l.b16 %v1331
      %v1460 = vunpack.c.h.b16 %v1331
      %v1461 = vunpack.c.l.b16 %v1332
      %v1462 = vunpack.c.h.b16 %v1332
      %v1463 = vunpack.c.l.b16 %v1333
      %v1464 = vunpack.c.h.b16 %v1333
      %v1465 = vunpack.c.l.b16 %v1334
      %v1466 = vunpack.c.h.b16 %v1334
      %v1467 = vunpack.c.l.b16 %v1335
      %v1468 = vunpack.c.h.b16 %v1335
      %v1469 = vunpack.c.l.b16 %v1336
      %v1470 = vunpack.c.h.b16 %v1336
      %v1471 = vunpack.c.l.b16 %v1337
      %v1472 = vunpack.c.h.b16 %v1337
      %v1473 = vunpack.c.l.b16 %v1338
      %v1474 = vunpack.c.h.b16 %v1338
      %v1475 = vunpack.c.l.b16 %v1339
      %v1476 = vunpack.c.h.b16 %v1339
      %v1477 = vunpack.c.l.b16 %v1340
      %v1478 = vunpack.c.h.b16 %v1340
      %v1479 = vunpack.c.l.b16 %v1341
      %v1480 = vunpack.c.h.b16 %v1341
      %v1481 = vunpack.c.l.b16 %v1342
      %v1482 = vunpack.c.h.b16 %v1342
      %v1483 = vunpack.c.l.b16 %v1343
      %v1484 = vunpack.c.h.b16 %v1343
      %v1485 = vunpack.c.l.b16 %v1344
      %v1486 = vunpack.c.h.b16 %v1344
      %v1487 = vunpack.c.l.b16 %v1345
      %v1488 = vunpack.c.h.b16 %v1345
      %v1489 = vunpack.c.l.b16 %v1346
      %v1490 = vunpack.c.h.b16 %v1346
      %v1491 = vunpack.c.l.b16 %v1347
      %v1492 = vunpack.c.h.b16 %v1347
      %v1493 = vunpack.c.l.b16 %v1348
      %v1494 = vunpack.c.h.b16 %v1348
      %v1495 = vunpack.c.l.b16 %v1349
      %v1496 = vunpack.c.h.b16 %v1349
      %v1497 = vunpack.c.l.b16 %v1350
      %v1498 = vunpack.c.h.b16 %v1350
      %v1499 = vunpack.c.l.b16 %v1351
      %v1500 = vunpack.c.h.b16 %v1351
      %v1501 = vunpack.c.l.b16 %v1352
      %v1502 = vunpack.c.h.b16 %v1352
      %v1503 = vunpack.c.l.b16 %v1353
      %v1504 = vunpack.c.h.b16 %v1353
      %v1505 = vunpack.c.l.b16 %v1354
      %v1506 = vunpack.c.h.b16 %v1354
      %v1507 = vunpack.c.l.b16 %v1355
      %v1508 = vunpack.c.h.b16 %v1355
      %v1509 = vunpack.c.l.b16 %v1356
      %v1510 = vunpack.c.h.b16 %v1356
      %v1511 = vunpack.c.l.b16 %v1357
      %v1512 = vunpack.c.h.b16 %v1357
      %v1513 = vunpack.c.l.b16 %v1358
      %v1514 = vunpack.c.h.b16 %v1358
      %v1515 = vunpack.c.l.b16 %v1359
      %v1516 = vunpack.c.h.b16 %v1359
      %v1517 = vunpack.c.l.b16 %v1360
      %v1518 = vunpack.c.h.b16 %v1360
      %v1519 = vunpack.c.l.b16 %v1361
      %v1520 = vunpack.c.h.b16 %v1361
      %v1521 = vunpack.c.l.b16 %v1362
      %v1522 = vunpack.c.h.b16 %v1362
      %v1523 = vunpack.c.l.b16 %v1363
      %v1524 = vunpack.c.h.b16 %v1363
      %v1525 = vunpack.c.l.b16 %v1364
      %v1526 = vunpack.c.h.b16 %v1364
      %v1527 = vunpack.c.l.b16 %v1365
      %v1528 = vunpack.c.h.b16 %v1365
      %v1529 = vunpack.c.l.b16 %v1366
      %v1530 = vunpack.c.h.b16 %v1366
      %v1531 = vunpack.c.l.b16 %v1367
      %v1532 = vunpack.c.h.b16 %v1367
      %v1533 = vunpack.c.l.b16 %v1368
      %v1534 = vunpack.c.h.b16 %v1368
      %v1535 = vunpack.c.l.b16 %v1369
      %v1536 = vunpack.c.h.b16 %v1369
      %v1537 = vunpack.c.l.b16 %v1370
      %v1538 = vunpack.c.h.b16 %v1370
      %v1539 = vunpack.c.l.b16 %v1371
      %v1540 = vunpack.c.h.b16 %v1371
      %v1541 = vunpack.c.l.b16 %v1372
      %v1542 = vunpack.c.h.b16 %v1372
      %v1543 = vunpack.c.l.b16 %v1373
      %v1544 = vunpack.c.h.b16 %v1373
      %v1545 = vunpack.c.l.b16 %v1374
      %v1546 = vunpack.c.h.b16 %v1374
      %v1547 = vunpack.c.l.b16 %v1375
      %v1548 = vunpack.c.h.b16 %v1375
      %v1549 = vunpack.c.l.b16 %v1376
      %v1550 = vunpack.c.h.b16 %v1376
      %v1551 = vunpack.c.l.b16 %v1377
      %v1552 = vunpack.c.h.b16 %v1377
      %v1553 = vunpack.c.l.b16 %v1378
      %v1554 = vunpack.c.h.b16 %v1378
      %v1555 = vunpack.c.l.b16 %v1379
      %v1556 = vunpack.c.h.b16 %v1379
      %v1557 = vunpack.c.l.b16 %v1380
      %v1558 = vunpack.c.h.b16 %v1380
      %v1559 = vunpack.c.l.b16 %v1381
      %v1560 = vunpack.c.h.b16 %v1381
      %v1561 = vunpack.c.l.b16 %v1382
      %v1562 = vunpack.c.h.b16 %v1382
      %v1563 = vunpack.c.l.b16 %v1383
      %v1564 = vunpack.c.h.b16 %v1383
      %v1565 = vunpack.c.l.b16 %v1384
      %v1566 = vunpack.c.h.b16 %v1384
      %v1567 = vunpack.c.l.b16 %v1385
      %v1568 = vunpack.c.h.b16 %v1385
      %v1569 = vunpack.c.l.b16 %v1386
      %v1570 = vunpack.c.h.b16 %v1386
      %v1571 = vunpack.c.l.b16 %v1387
      %v1572 = vunpack.c.h.b16 %v1387
      %v1573 = vunpack.c.l.b16 %v1388
      %v1574 = vunpack.c.h.b16 %v1388
      %v1575 = vunpack.c.l.b16 %v1389
      %v1576 = vunpack.c.h.b16 %v1389
      %v1577 = vunpack.c.l.b16 %v1390
      %v1578 = vunpack.c.h.b16 %v1390
      %v1579 = vunpack.c.l.b16 %v1391
      %v1580 = vunpack.c.h.b16 %v1391
      %v1581 = vunpack.c.l.b16 %v1392
      %v1582 = vunpack.c.h.b16 %v1392
      %v1583 = vunpack.c.l.b16 %v1393
      %v1584 = vunpack.c.h.b16 %v1393
      %v1585 = vunpack.c.l.b16 %v1394
      %v1586 = vunpack.c.h.b16 %v1394
      %v1587 = vpack.c.b16 %v1467, %v1459
      %v1588 = vpack.c.b16 %v1468, %v1460
      %v1589 = vpack.c.b16 %v1469, %v1461
      %v1590 = vpack.c.b16 %v1470, %v1462
      %v1591 = vpack.c.b16 %v1471, %v1463
      %v1592 = vpack.c.b16 %v1472, %v1464
      %v1593 = vpack.c.b16 %v1473, %v1465
      %v1594 = vpack.c.b16 %v1474, %v1466
      %v1595 = vpack.c.b16 %v1483, %v1475
      %v1596 = vpack.c.b16 %v1484, %v1476
      %v1597 = vpack.c.b16 %v1485, %v1477
      %v1598 = vpack.c.b16 %v1486, %v1478
      %v1599 = vpack.c.b16 %v1487, %v1479
      %v1600 = vpack.c.b16 %v1488, %v1480
      %v1601 = vpack.c.b16 %v1489, %v1481
      %v1602 = vpack.c.b16 %v1490, %v1482
      %v1603 = vpack.c.b16 %v1499, %v1491
      %v1604 = vpack.c.b16 %v1500, %v1492
      %v1605 = vpack.c.b16 %v1501, %v1493
      %v1606 = vpack.c.b16 %v1502, %v1494
      %v1607 = vpack.c.b16 %v1503, %v1495
      %v1608 = vpack.c.b16 %v1504, %v1496
      %v1609 = vpack.c.b16 %v1505, %v1497
      %v1610 = vpack.c.b16 %v1506, %v1498
      %v1611 = vpack.c.b16 %v1515, %v1507
      %v1612 = vpack.c.b16 %v1516, %v1508
      %v1613 = vpack.c.b16 %v1517, %v1509
      %v1614 = vpack.c.b16 %v1518, %v1510
      %v1615 = vpack.c.b16 %v1519, %v1511
      %v1616 = vpack.c.b16 %v1520, %v1512
      %v1617 = vpack.c.b16 %v1521, %v1513
      %v1618 = vpack.c.b16 %v1522, %v1514
      %v1619 = vpack.c.b16 %v1531, %v1523
      %v1620 = vpack.c.b16 %v1532, %v1524
      %v1621 = vpack.c.b16 %v1533, %v1525
      %v1622 = vpack.c.b16 %v1534, %v1526
      %v1623 = vpack.c.b16 %v1535, %v1527
      %v1624 = vpack.c.b16 %v1536, %v1528
      %v1625 = vpack.c.b16 %v1537, %v1529
      %v1626 = vpack.c.b16 %v1538, %v1530
      %v1627 = vpack.c.b16 %v1547, %v1539
      %v1628 = vpack.c.b16 %v1548, %v1540
      %v1629 = vpack.c.b16 %v1549, %v1541
      %v1630 = vpack.c.b16 %v1550, %v1542
      %v1631 = vpack.c.b16 %v1551, %v1543
      %v1632 = vpack.c.b16 %v1552, %v1544
      %v1633 = vpack.c.b16 %v1553, %v1545
      %v1634 = vpack.c.b16 %v1554, %v1546
      %v1635 = vpack.c.b16 %v1563, %v1555
      %v1636 = vpack.c.b16 %v1564, %v1556
      %v1637 = vpack.c.b16 %v1565, %v1557
      %v1638 = vpack.c.b16 %v1566, %v1558
      %v1639 = vpack.c.b16 %v1567, %v1559
      %v1640 = vpack.c.b16 %v1568, %v1560
      %v1641 = vpack.c.b16 %v1569, %v1561
      %v1642 = vpack.c.b16 %v1570, %v1562
      %v1643 = vpack.c.b16 %v1579, %v1571
      %v1644 = vpack.c.b16 %v1580, %v1572
      %v1645 = vpack.c.b16 %v1581, %v1573
      %v1646 = vpack.c.b16 %v1582, %v1574
      %v1647 = vpack.c.b16 %v1583, %v1575
      %v1648 = vpack.c.b16 %v1584, %v1576
      %v1649 = vpack.c.b16 %v1585, %v1577
      %v1650 = vpack.c.b16 %v1586, %v1578
      %1715 = vmatprep.subr.bf16.mxu0 %v1204
      %1716 = vmatpush1.bf16.msra.mxu0 %v1203
      %1717 = vmatprep.subr.bf16.mxu0 %v1206
      %1718 = vmatpush1.bf16.msra.mxu0 %v1205
      %1719 = vmatprep.subr.bf16.mxu0 %v1208
      %1720 = vmatpush1.bf16.msra.mxu0 %v1207
      %1721 = vmatprep.subr.bf16.mxu0 %v1210
      %1722 = vmatpush1.bf16.msra.mxu0 %v1209
      %1723 = vmatprep.subr.bf16.mxu0 %v1212
      %1724 = vmatpush1.bf16.msra.mxu0 %v1211
      %1725 = vmatprep.subr.bf16.mxu0 %v1214
      %1726 = vmatpush1.bf16.msra.mxu0 %v1213
      %1727 = vmatprep.subr.bf16.mxu0 %v1216
      %1728 = vmatpush1.bf16.msra.mxu0 %v1215
      %1729 = vmatprep.subr.bf16.mxu0 %v1218
      %1730 = vmatpush1.bf16.msra.mxu0 %v1217
      %1731 = vmatprep.subr.bf16.mxu0 %v1220
      %1732 = vmatpush1.bf16.msra.mxu0 %v1219
      %1733 = vmatprep.subr.bf16.mxu0 %v1222
      %1734 = vmatpush1.bf16.msra.mxu0 %v1221
      %1735 = vmatprep.subr.bf16.mxu0 %v1224
      %1736 = vmatpush1.bf16.msra.mxu0 %v1223
      %1737 = vmatprep.subr.bf16.mxu0 %v1226
      %1738 = vmatpush1.bf16.msra.mxu0 %v1225
      %1739 = vmatprep.subr.bf16.mxu0 %v1228
      %1740 = vmatpush1.bf16.msra.mxu0 %v1227
      %1741 = vmatprep.subr.bf16.mxu0 %v1230
      %1742 = vmatpush1.bf16.msra.mxu0 %v1229
      %1743 = vmatprep.subr.bf16.mxu0 %v1232
      %1744 = vmatpush1.bf16.msra.mxu0 %v1231
      %1745 = vmatprep.subr.bf16.mxu0 %v1234
      %1746 = vmatpush1.bf16.msra.mxu0 %v1233
      %1747 = vmatprep.mubr.bf16.mxu0 %v1588
      %1748 = vmatmul.mubr.bf16.gmra.mrb[0].mxu0 %v1587
      %v1749 = vpop.f32.mrb[0].mxu0
      %v1750 = vadd.f32 0.0, %v1749
      %v1751 = vpop.f32.mrb[0].mxu0
      %v1752 = vadd.f32 0.0, %v1751
      %v1753 = vpop.f32.mrb[0].mxu0
      %v1754 = vadd.f32 0.0, %v1753
      %v1755 = vpop.f32.mrb[0].mxu0
      %v1756 = vadd.f32 0.0, %v1755
      %1757 = vmatprep.mubr.bf16.mxu0 %v1596
      %1758 = vmatmul.mubr.bf16.gmra.mrb[0].mxu0 %v1595
      %v1759 = vpop.f32.mrb[0].mxu0
      %v1760 = vadd.f32 0.0, %v1759
      %v1761 = vpop.f32.mrb[0].mxu0
      %v1762 = vadd.f32 0.0, %v1761
      %v1763 = vpop.f32.mrb[0].mxu0
      %v1764 = vadd.f32 0.0, %v1763
      %v1765 = vpop.f32.mrb[0].mxu0
      %v1766 = vadd.f32 0.0, %v1765
      %1767 = vmatprep.mubr.bf16.mxu0 %v1604
      %1768 = vmatmul.mubr.bf16.gmra.mrb[0].mxu0 %v1603
      %v1769 = vpop.f32.mrb[0].mxu0
      %v1770 = vadd.f32 0.0, %v1769
      %v1771 = vpop.f32.mrb[0].mxu0
      %v1772 = vadd.f32 0.0, %v1771
      %v1773 = vpop.f32.mrb[0].mxu0
      %v1774 = vadd.f32 0.0, %v1773
      %v1775 = vpop.f32.mrb[0].mxu0
      %v1776 = vadd.f32 0.0, %v1775
      %1777 = vmatprep.mubr.bf16.mxu0 %v1612
      %1778 = vmatmul.mubr.bf16.gmra.mrb[0].mxu0 %v1611
      %v1779 = vpop.f32.mrb[0].mxu0
      %v1780 = vadd.f32 0.0, %v1779
      %v1781 = vpop.f32.mrb[0].mxu0
      %v1782 = vadd.f32 0.0, %v1781
      %v1783 = vpop.f32.mrb[0].mxu0
      %v1784 = vadd.f32 0.0, %v1783
      %v1785 = vpop.f32.mrb[0].mxu0
      %v1786 = vadd.f32 0.0, %v1785
      %1787 = vmatprep.mubr.bf16.mxu0 %v1620
      %1788 = vmatmul.mubr.bf16.gmra.mrb[0].mxu0 %v1619
      %v1789 = vpop.f32.mrb[0].mxu0
      %v1790 = vadd.f32 0.0, %v1789
      %v1791 = vpop.f32.mrb[0].mxu0
      %v1792 = vadd.f32 0.0, %v1791
      %v1793 = vpop.f32.mrb[0].mxu0
      %v1794 = vadd.f32 0.0, %v1793
      %v1795 = vpop.f32.mrb[0].mxu0
      %v1796 = vadd.f32 0.0, %v1795
      %1797 = vmatprep.mubr.bf16.mxu0 %v1628
      %1798 = vmatmul.mubr.bf16.gmra.mrb[0].mxu0 %v1627
      %v1799 = vpop.f32.mrb[0].mxu0
      %v1800 = vadd.f32 0.0, %v1799
      %v1801 = vpop.f32.mrb[0].mxu0
      %v1802 = vadd.f32 0.0, %v1801
      %v1803 = vpop.f32.mrb[0].mxu0
      %v1804 = vadd.f32 0.0, %v1803
      %v1805 = vpop.f32.mrb[0].mxu0
      %v1806 = vadd.f32 0.0, %v1805
      %1807 = vmatprep.mubr.bf16.mxu0 %v1636
      %1808 = vmatmul.mubr.bf16.gmra.mrb[0].mxu0 %v1635
      %v1809 = vpop.f32.mrb[0].mxu0
      %v1810 = vadd.f32 0.0, %v1809
      %v1811 = vpop.f32.mrb[0].mxu0
      %v1812 = vadd.f32 0.0, %v1811
      %v1813 = vpop.f32.mrb[0].mxu0
      %v1814 = vadd.f32 0.0, %v1813
      %v1815 = vpop.f32.mrb[0].mxu0
      %v1816 = vadd.f32 0.0, %v1815
      %1817 = vmatprep.mubr.bf16.mxu0 %v1644
      %1818 = vmatmul.mubr.bf16.gmra.mrb[0].mxu0 %v1643
      %v1819 = vpop.f32.mrb[0].mxu0
      %v1820 = vadd.f32 0.0, %v1819
      %v1821 = vpop.f32.mrb[0].mxu0
      %v1822 = vadd.f32 0.0, %v1821
      %v1823 = vpop.f32.mrb[0].mxu0
      %v1824 = vadd.f32 0.0, %v1823
      %v1825 = vpop.f32.mrb[0].mxu0
      %v1826 = vadd.f32 0.0, %v1825
      %1827 = vdwg.mxu0
      %1828 = vmatprep.subr.bf16.mxu0 %v1236
      %1829 = vmatpush1.bf16.msra.mxu0 %v1235
      %1830 = vmatprep.subr.bf16.mxu0 %v1238
      %1831 = vmatpush1.bf16.msra.mxu0 %v1237
      %1832 = vmatprep.subr.bf16.mxu0 %v1240
      %1833 = vmatpush1.bf16.msra.mxu0 %v1239
      %1834 = vmatprep.subr.bf16.mxu0 %v1242
      %1835 = vmatpush1.bf16.msra.mxu0 %v1241
      %1836 = vmatprep.subr.bf16.mxu0 %v1244
      %1837 = vmatpush1.bf16.msra.mxu0 %v1243
      %1838 = vmatprep.subr.bf16.mxu0 %v1246
      %1839 = vmatpush1.bf16.msra.mxu0 %v1245
      %1840 = vmatprep.subr.bf16.mxu0 %v1248
      %1841 = vmatpush1.bf16.msra.mxu0 %v1247
      %1842 = vmatprep.subr.bf16.mxu0 %v1250
      %1843 = vmatpush1.bf16.msra.mxu0 %v1249
      %1844 = vmatprep.subr.bf16.mxu0 %v1252
      %1845 = vmatpush1.bf16.msra.mxu0 %v1251
      %1846 = vmatprep.subr.bf16.mxu0 %v1254
      %1847 = vmatpush1.bf16.msra.mxu0 %v1253
      %1848 = vmatprep.subr.bf16.mxu0 %v1256
      %1849 = vmatpush1.bf16.msra.mxu0 %v1255
      %1850 = vmatprep.subr.bf16.mxu0 %v1258
      %1851 = vmatpush1.bf16.msra.mxu0 %v1257
      %1852 = vmatprep.subr.bf16.mxu0 %v1260
      %1853 = vmatpush1.bf16.msra.mxu0 %v1259
      %1854 = vmatprep.subr.bf16.mxu0 %v1262
      %1855 = vmatpush1.bf16.msra.mxu0 %v1261
      %1856 = vmatprep.subr.bf16.mxu0 %v1264
      %1857 = vmatpush1.bf16.msra.mxu0 %v1263
      %1858 = vmatprep.subr.bf16.mxu0 %v1266
      %1859 = vmatpush1.bf16.msra.mxu0 %v1265
      %1860 = vmatprep.mubr.bf16.mxu0 %v1590
      %1861 = vmatmul.mubr.bf16.gmra.mrb[0].mxu0 %v1589
      %v1862 = vpop.f32.mrb[0].mxu0
      %v1863 = vadd.f32 %v1750, %v1862
      %v1864 = vpop.f32.mrb[0].mxu0
      %v1865 = vadd.f32 %v1752, %v1864
      %v1866 = vpop.f32.mrb[0].mxu0
      %v1867 = vadd.f32 %v1754, %v1866
      %v1868 = vpop.f32.mrb[0].mxu0
      %v1869 = vadd.f32 %v1756, %v1868
      %1870 = vmatprep.mubr.bf16.mxu0 %v1598
      %1871 = vmatmul.mubr.bf16.gmra.mrb[0].mxu0 %v1597
      %v1872 = vpop.f32.mrb[0].mxu0
      %v1873 = vadd.f32 %v1760, %v1872
      %v1874 = vpop.f32.mrb[0].mxu0
      %v1875 = vadd.f32 %v1762, %v1874
      %v1876 = vpop.f32.mrb[0].mxu0
      %v1877 = vadd.f32 %v1764, %v1876
      %v1878 = vpop.f32.mrb[0].mxu0
      %v1879 = vadd.f32 %v1766, %v1878
      %1880 = vmatprep.mubr.bf16.mxu0 %v1606
      %1881 = vmatmul.mubr.bf16.gmra.mrb[0].mxu0 %v1605
      %v1882 = vpop.f32.mrb[0].mxu0
      %v1883 = vadd.f32 %v1770, %v1882
      %v1884 = vpop.f32.mrb[0].mxu0
      %v1885 = vadd.f32 %v1772, %v1884
      %v1886 = vpop.f32.mrb[0].mxu0
      %v1887 = vadd.f32 %v1774, %v1886
      %v1888 = vpop.f32.mrb[0].mxu0
      %v1889 = vadd.f32 %v1776, %v1888
      %1890 = vmatprep.mubr.bf16.mxu0 %v1614
      %1891 = vmatmul.mubr.bf16.gmra.mrb[0].mxu0 %v1613
      %v1892 = vpop.f32.mrb[0].mxu0
      %v1893 = vadd.f32 %v1780, %v1892
      %v1894 = vpop.f32.mrb[0].mxu0
      %v1895 = vadd.f32 %v1782, %v1894
      %v1896 = vpop.f32.mrb[0].mxu0
      %v1897 = vadd.f32 %v1784, %v1896
      %v1898 = vpop.f32.mrb[0].mxu0
      %v1899 = vadd.f32 %v1786, %v1898
      %1900 = vmatprep.mubr.bf16.mxu0 %v1622
      %1901 = vmatmul.mubr.bf16.gmra.mrb[0].mxu0 %v1621
      %v1902 = vpop.f32.mrb[0].mxu0
      %v1903 = vadd.f32 %v1790, %v1902
      %v1904 = vpop.f32.mrb[0].mxu0
      %v1905 = vadd.f32 %v1792, %v1904
      %v1906 = vpop.f32.mrb[0].mxu0
      %v1907 = vadd.f32 %v1794, %v1906
      %v1908 = vpop.f32.mrb[0].mxu0
      %v1909 = vadd.f32 %v1796, %v1908
      %1910 = vmatprep.mubr.bf16.mxu0 %v1630
      %1911 = vmatmul.mubr.bf16.gmra.mrb[0].mxu0 %v1629
      %v1912 = vpop.f32.mrb[0].mxu0
      %v1913 = vadd.f32 %v1800, %v1912
      %v1914 = vpop.f32.mrb[0].mxu0
      %v1915 = vadd.f32 %v1802, %v1914
      %v1916 = vpop.f32.mrb[0].mxu0
      %v1917 = vadd.f32 %v1804, %v1916
      %v1918 = vpop.f32.mrb[0].mxu0
      %v1919 = vadd.f32 %v1806, %v1918
      %1920 = vmatprep.mubr.bf16.mxu0 %v1638
      %1921 = vmatmul.mubr.bf16.gmra.mrb[0].mxu0 %v1637
      %v1922 = vpop.f32.mrb[0].mxu0
      %v1923 = vadd.f32 %v1810, %v1922
      %v1924 = vpop.f32.mrb[0].mxu0
      %v1925 = vadd.f32 %v1812, %v1924
      %v1926 = vpop.f32.mrb[0].mxu0
      %v1927 = vadd.f32 %v1814, %v1926
      %v1928 = vpop.f32.mrb[0].mxu0
      %v1929 = vadd.f32 %v1816, %v1928
      %1930 = vmatprep.mubr.bf16.mxu0 %v1646
      %1931 = vmatmul.mubr.bf16.gmra.mrb[0].mxu0 %v1645
      %v1932 = vpop.f32.mrb[0].mxu0
      %v1933 = vadd.f32 %v1820, %v1932
      %v1934 = vpop.f32.mrb[0].mxu0
      %v1935 = vadd.f32 %v1822, %v1934
      %v1936 = vpop.f32.mrb[0].mxu0
      %v1937 = vadd.f32 %v1824, %v1936
      %v1938 = vpop.f32.mrb[0].mxu0
      %v1939 = vadd.f32 %v1826, %v1938
      %1940 = vdwg.mxu0
      %1941 = vmatprep.subr.bf16.mxu0 %v1268
      %1942 = vmatpush1.bf16.msra.mxu0 %v1267
      %1943 = vmatprep.subr.bf16.mxu0 %v1270
      %1944 = vmatpush1.bf16.msra.mxu0 %v1269
      %1945 = vmatprep.subr.bf16.mxu0 %v1272
      %1946 = vmatpush1.bf16.msra.mxu0 %v1271
      %1947 = vmatprep.subr.bf16.mxu0 %v1274
      %1948 = vmatpush1.bf16.msra.mxu0 %v1273
      %1949 = vmatprep.subr.bf16.mxu0 %v1276
      %1950 = vmatpush1.bf16.msra.mxu0 %v1275
      %1951 = vmatprep.subr.bf16.mxu0 %v1278
      %1952 = vmatpush1.bf16.msra.mxu0 %v1277
      %1953 = vmatprep.subr.bf16.mxu0 %v1280
      %1954 = vmatpush1.bf16.msra.mxu0 %v1279
      %1955 = vmatprep.subr.bf16.mxu0 %v1282
      %1956 = vmatpush1.bf16.msra.mxu0 %v1281
      %1957 = vmatprep.subr.bf16.mxu0 %v1284
      %1958 = vmatpush1.bf16.msra.mxu0 %v1283
      %1959 = vmatprep.subr.bf16.mxu0 %v1286
      %1960 = vmatpush1.bf16.msra.mxu0 %v1285
      %1961 = vmatprep.subr.bf16.mxu0 %v1288
      %1962 = vmatpush1.bf16.msra.mxu0 %v1287
      %1963 = vmatprep.subr.bf16.mxu0 %v1290
      %1964 = vmatpush1.bf16.msra.mxu0 %v1289
      %1965 = vmatprep.subr.bf16.mxu0 %v1292
      %1966 = vmatpush1.bf16.msra.mxu0 %v1291
      %1967 = vmatprep.subr.bf16.mxu0 %v1294
      %1968 = vmatpush1.bf16.msra.mxu0 %v1293
      %1969 = vmatprep.subr.bf16.mxu0 %v1296
      %1970 = vmatpush1.bf16.msra.mxu0 %v1295
      %1971 = vmatprep.subr.bf16.mxu0 %v1298
      %1972 = vmatpush1.bf16.msra.mxu0 %v1297
      %1973 = vmatprep.mubr.bf16.mxu0 %v1592
      %1974 = vmatmul.mubr.bf16.gmra.mrb[0].mxu0 %v1591
      %v1975 = vpop.f32.mrb[0].mxu0
      %v1976 = vadd.f32 %v1863, %v1975
      %v1977 = vpop.f32.mrb[0].mxu0
      %v1978 = vadd.f32 %v1865, %v1977
      %v1979 = vpop.f32.mrb[0].mxu0
      %v1980 = vadd.f32 %v1867, %v1979
      %v1981 = vpop.f32.mrb[0].mxu0
      %v1982 = vadd.f32 %v1869, %v1981
      %1983 = vmatprep.mubr.bf16.mxu0 %v1600
      %1984 = vmatmul.mubr.bf16.gmra.mrb[0].mxu0 %v1599
      %v1985 = vpop.f32.mrb[0].mxu0
      %v1986 = vadd.f32 %v1873, %v1985
      %v1987 = vpop.f32.mrb[0].mxu0
      %v1988 = vadd.f32 %v1875, %v1987
      %v1989 = vpop.f32.mrb[0].mxu0
      %v1990 = vadd.f32 %v1877, %v1989
      %v1991 = vpop.f32.mrb[0].mxu0
      %v1992 = vadd.f32 %v1879, %v1991
      %1993 = vmatprep.mubr.bf16.mxu0 %v1608
      %1994 = vmatmul.mubr.bf16.gmra.mrb[0].mxu0 %v1607
      %v1995 = vpop.f32.mrb[0].mxu0
      %v1996 = vadd.f32 %v1883, %v1995
      %v1997 = vpop.f32.mrb[0].mxu0
      %v1998 = vadd.f32 %v1885, %v1997
      %v1999 = vpop.f32.mrb[0].mxu0
      %v2000 = vadd.f32 %v1887, %v1999
      %v2001 = vpop.f32.mrb[0].mxu0
      %v2002 = vadd.f32 %v1889, %v2001
      %2003 = vmatprep.mubr.bf16.mxu0 %v1616
      %2004 = vmatmul.mubr.bf16.gmra.mrb[0].mxu0 %v1615
      %v2005 = vpop.f32.mrb[0].mxu0
      %v2006 = vadd.f32 %v1893, %v2005
      %v2007 = vpop.f32.mrb[0].mxu0
      %v2008 = vadd.f32 %v1895, %v2007
      %v2009 = vpop.f32.mrb[0].mxu0
      %v2010 = vadd.f32 %v1897, %v2009
      %v2011 = vpop.f32.mrb[0].mxu0
      %v2012 = vadd.f32 %v1899, %v2011
      %2013 = vmatprep.mubr.bf16.mxu0 %v1624
      %2014 = vmatmul.mubr.bf16.gmra.mrb[0].mxu0 %v1623
      %v2015 = vpop.f32.mrb[0].mxu0
      %v2016 = vadd.f32 %v1903, %v2015
      %v2017 = vpop.f32.mrb[0].mxu0
      %v2018 = vadd.f32 %v1905, %v2017
      %v2019 = vpop.f32.mrb[0].mxu0
      %v2020 = vadd.f32 %v1907, %v2019
      %v2021 = vpop.f32.mrb[0].mxu0
      %v2022 = vadd.f32 %v1909, %v2021
      %2023 = vmatprep.mubr.bf16.mxu0 %v1632
      %2024 = vmatmul.mubr.bf16.gmra.mrb[0].mxu0 %v1631
      %v2025 = vpop.f32.mrb[0].mxu0
      %v2026 = vadd.f32 %v1913, %v2025
      %v2027 = vpop.f32.mrb[0].mxu0
      %v2028 = vadd.f32 %v1915, %v2027
      %v2029 = vpop.f32.mrb[0].mxu0
      %v2030 = vadd.f32 %v1917, %v2029
      %v2031 = vpop.f32.mrb[0].mxu0
      %v2032 = vadd.f32 %v1919, %v2031
      %2033 = vmatprep.mubr.bf16.mxu0 %v1640
      %2034 = vmatmul.mubr.bf16.gmra.mrb[0].mxu0 %v1639
      %v2035 = vpop.f32.mrb[0].mxu0
      %v2036 = vadd.f32 %v1923, %v2035
      %v2037 = vpop.f32.mrb[0].mxu0
      %v2038 = vadd.f32 %v1925, %v2037
      %v2039 = vpop.f32.mrb[0].mxu0
      %v2040 = vadd.f32 %v1927, %v2039
      %v2041 = vpop.f32.mrb[0].mxu0
      %v2042 = vadd.f32 %v1929, %v2041
      %2043 = vmatprep.mubr.bf16.mxu0 %v1648
      %2044 = vmatmul.mubr.bf16.gmra.mrb[0].mxu0 %v1647
      %v2045 = vpop.f32.mrb[0].mxu0
      %v2046 = vadd.f32 %v1933, %v2045
      %v2047 = vpop.f32.mrb[0].mxu0
      %v2048 = vadd.f32 %v1935, %v2047
      %v2049 = vpop.f32.mrb[0].mxu0
      %v2050 = vadd.f32 %v1937, %v2049
      %v2051 = vpop.f32.mrb[0].mxu0
      %v2052 = vadd.f32 %v1939, %v2051
      %2053 = vdwg.mxu0
      %2054 = vmatprep.subr.bf16.mxu0 %v1300
      %2055 = vmatpush1.bf16.msra.mxu0 %v1299
      %2056 = vmatprep.subr.bf16.mxu0 %v1302
      %2057 = vmatpush1.bf16.msra.mxu0 %v1301
      %2058 = vmatprep.subr.bf16.mxu0 %v1304
      %2059 = vmatpush1.bf16.msra.mxu0 %v1303
      %2060 = vmatprep.subr.bf16.mxu0 %v1306
      %2061 = vmatpush1.bf16.msra.mxu0 %v1305
      %2062 = vmatprep.subr.bf16.mxu0 %v1308
      %2063 = vmatpush1.bf16.msra.mxu0 %v1307
      %2064 = vmatprep.subr.bf16.mxu0 %v1310
      %2065 = vmatpush1.bf16.msra.mxu0 %v1309
      %2066 = vmatprep.subr.bf16.mxu0 %v1312
      %2067 = vmatpush1.bf16.msra.mxu0 %v1311
      %2068 = vmatprep.subr.bf16.mxu0 %v1314
      %2069 = vmatpush1.bf16.msra.mxu0 %v1313
      %2070 = vmatprep.subr.bf16.mxu0 %v1316
      %2071 = vmatpush1.bf16.msra.mxu0 %v1315
      %2072 = vmatprep.subr.bf16.mxu0 %v1318
      %2073 = vmatpush1.bf16.msra.mxu0 %v1317
      %2074 = vmatprep.subr.bf16.mxu0 %v1320
      %2075 = vmatpush1.bf16.msra.mxu0 %v1319
      %2076 = vmatprep.subr.bf16.mxu0 %v1322
      %2077 = vmatpush1.bf16.msra.mxu0 %v1321
      %2078 = vmatprep.subr.bf16.mxu0 %v1324
      %2079 = vmatpush1.bf16.msra.mxu0 %v1323
      %2080 = vmatprep.subr.bf16.mxu0 %v1326
      %2081 = vmatpush1.bf16.msra.mxu0 %v1325
      %2082 = vmatprep.subr.bf16.mxu0 %v1328
      %2083 = vmatpush1.bf16.msra.mxu0 %v1327
      %2084 = vmatprep.subr.bf16.mxu0 %v1330
      %2085 = vmatpush1.bf16.msra.mxu0 %v1329
      %2086 = vmatprep.mubr.bf16.mxu0 %v1594
      %2087 = vmatmul.mubr.bf16.gmra.mrb[0].mxu0 %v1593
      %v2088 = vpop.f32.mrb[0].mxu0
      %v2089 = vadd.f32 %v1976, %v2088
      %v2090 = vpop.f32.mrb[0].mxu0
      %v2091 = vadd.f32 %v1978, %v2090
      %v2092 = vpop.f32.mrb[0].mxu0
      %v2093 = vadd.f32 %v1980, %v2092
      %v2094 = vpop.f32.mrb[0].mxu0
      %v2095 = vadd.f32 %v1982, %v2094
      %2096 = vmatprep.mubr.bf16.mxu0 %v1602
      %2097 = vmatmul.mubr.bf16.gmra.mrb[0].mxu0 %v1601
      %v2098 = vpop.f32.mrb[0].mxu0
      %v2099 = vadd.f32 %v1986, %v2098
      %v2100 = vpop.f32.mrb[0].mxu0
      %v2101 = vadd.f32 %v1988, %v2100
      %v2102 = vpop.f32.mrb[0].mxu0
      %v2103 = vadd.f32 %v1990, %v2102
      %v2104 = vpop.f32.mrb[0].mxu0
      %v2105 = vadd.f32 %v1992, %v2104
      %2106 = vmatprep.mubr.bf16.mxu0 %v1610
      %2107 = vmatmul.mubr.bf16.gmra.mrb[0].mxu0 %v1609
      %v2108 = vpop.f32.mrb[0].mxu0
      %v2109 = vadd.f32 %v1996, %v2108
      %v2110 = vpop.f32.mrb[0].mxu0
      %v2111 = vadd.f32 %v1998, %v2110
      %v2112 = vpop.f32.mrb[0].mxu0
      %v2113 = vadd.f32 %v2000, %v2112
      %v2114 = vpop.f32.mrb[0].mxu0
      %v2115 = vadd.f32 %v2002, %v2114
      %2116 = vmatprep.mubr.bf16.mxu0 %v1618
      %2117 = vmatmul.mubr.bf16.gmra.mrb[0].mxu0 %v1617
      %v2118 = vpop.f32.mrb[0].mxu0
      %v2119 = vadd.f32 %v2006, %v2118
      %v2120 = vpop.f32.mrb[0].mxu0
      %v2121 = vadd.f32 %v2008, %v2120
      %v2122 = vpop.f32.mrb[0].mxu0
      %v2123 = vadd.f32 %v2010, %v2122
      %v2124 = vpop.f32.mrb[0].mxu0
      %v2125 = vadd.f32 %v2012, %v2124
      %2126 = vmatprep.mubr.bf16.mxu0 %v1626
      %2127 = vmatmul.mubr.bf16.gmra.mrb[0].mxu0 %v1625
      %v2128 = vpop.f32.mrb[0].mxu0
      %v2129 = vadd.f32 %v2016, %v2128
      %v2130 = vpop.f32.mrb[0].mxu0
      %v2131 = vadd.f32 %v2018, %v2130
      %v2132 = vpop.f32.mrb[0].mxu0
      %v2133 = vadd.f32 %v2020, %v2132
      %v2134 = vpop.f32.mrb[0].mxu0
      %v2135 = vadd.f32 %v2022, %v2134
      %2136 = vmatprep.mubr.bf16.mxu0 %v1634
      %2137 = vmatmul.mubr.bf16.gmra.mrb[0].mxu0 %v1633
      %v2138 = vpop.f32.mrb[0].mxu0
      %v2139 = vadd.f32 %v2026, %v2138
      %v2140 = vpop.f32.mrb[0].mxu0
      %v2141 = vadd.f32 %v2028, %v2140
      %v2142 = vpop.f32.mrb[0].mxu0
      %v2143 = vadd.f32 %v2030, %v2142
      %v2144 = vpop.f32.mrb[0].mxu0
      %v2145 = vadd.f32 %v2032, %v2144
      %2146 = vmatprep.mubr.bf16.mxu0 %v1642
      %2147 = vmatmul.mubr.bf16.gmra.mrb[0].mxu0 %v1641
      %v2148 = vpop.f32.mrb[0].mxu0
      %v2149 = vadd.f32 %v2036, %v2148
      %v2150 = vpop.f32.mrb[0].mxu0
      %v2151 = vadd.f32 %v2038, %v2150
      %v2152 = vpop.f32.mrb[0].mxu0
      %v2153 = vadd.f32 %v2040, %v2152
      %v2154 = vpop.f32.mrb[0].mxu0
      %v2155 = vadd.f32 %v2042, %v2154
      %2156 = vmatprep.mubr.bf16.mxu0 %v1650
      %2157 = vmatmul.mubr.bf16.gmra.mrb[0].mxu0 %v1649
      %v2158 = vpop.f32.mrb[0].mxu0
      %v2159 = vadd.f32 %v2046, %v2158
      %v2160 = vpop.f32.mrb[0].mxu0
      %v2161 = vadd.f32 %v2048, %v2160
      %v2162 = vpop.f32.mrb[0].mxu0
      %v2163 = vadd.f32 %v2050, %v2162
      %v2164 = vpop.f32.mrb[0].mxu0
      %v2165 = vadd.f32 %v2052, %v2164
      %2166 = vdwg.mxu0
      %2167 = vst [vmem:[%s177] sm:$0xff] %v2089
      %vm2168 = vcmask 556032
      %2169 = vst.msk [vmem:[%s177 + $0x8] sm:$0xff] %vm2168, %v2091
      %2170 = vst [vmem:[%s177 + $0x10] sm:$0xff] %v2093
      %2171 = vst.msk [vmem:[%s177 + $0x18] sm:$0xff] %vm2168, %v2095
      %2172 = vst [vmem:[%s177 + $0x20] sm:$0xff] %v2099
      %2173 = vst.msk [vmem:[%s177 + $0x28] sm:$0xff] %vm2168, %v2101
      %2174 = vst [vmem:[%s177 + $0x30] sm:$0xff] %v2103
      %2175 = vst.msk [vmem:[%s177 + $0x38] sm:$0xff] %vm2168, %v2105
      %2176 = vst [vmem:[%s177 + $0x40] sm:$0xff] %v2109
      %2177 = vst.msk [vmem:[%s177 + $0x48] sm:$0xff] %vm2168, %v2111
      %2178 = vst [vmem:[%s177 + $0x50] sm:$0xff] %v2113
      %2179 = vst.msk [vmem:[%s177 + $0x58] sm:$0xff] %vm2168, %v2115
      %2180 = vst [vmem:[%s177 + $0x60] sm:$0xff] %v2119
      %2181 = vst.msk [vmem:[%s177 + $0x68] sm:$0xff] %vm2168, %v2121
      %2182 = vst [vmem:[%s177 + $0x70] sm:$0xff] %v2123
      %2183 = vst.msk [vmem:[%s177 + $0x78] sm:$0xff] %vm2168, %v2125
      %2184 = vst [vmem:[%s177 + $0x80] sm:$0xff] %v2129
      %2185 = vst.msk [vmem:[%s177 + $0x88] sm:$0xff] %vm2168, %v2131
      %2186 = vst [vmem:[%s177 + $0x90] sm:$0xff] %v2133
      %2187 = vst.msk [vmem:[%s177 + $0x98] sm:$0xff] %vm2168, %v2135
      %2188 = vst [vmem:[%s177 + $0xa0] sm:$0xff] %v2139
      %2189 = vst.msk [vmem:[%s177 + $0xa8] sm:$0xff] %vm2168, %v2141
      %2190 = vst [vmem:[%s177 + $0xb0] sm:$0xff] %v2143
      %2191 = vst.msk [vmem:[%s177 + $0xb8] sm:$0xff] %vm2168, %v2145
      %2192 = vst [vmem:[%s177 + $0xc0] sm:$0xff] %v2149
      %2193 = vst.msk [vmem:[%s177 + $0xc8] sm:$0xff] %vm2168, %v2151
      %2194 = vst [vmem:[%s177 + $0xd0] sm:$0xff] %v2153
      %2195 = vst.msk [vmem:[%s177 + $0xd8] sm:$0xff] %vm2168, %v2155
      %2196 = vst [vmem:[%s177 + $0xe0] sm:$0xff] %v2159
      %2197 = vst.msk [vmem:[%s177 + $0xe8] sm:$0xff] %vm2168, %v2161
      %2198 = vst [vmem:[%s177 + $0xf0] sm:$0xff] %v2163
      %2199 = vst.msk [vmem:[%s177 + $0xf8] sm:$0xff] %vm2168, %v2165
      %s2200 = smul.u32 16, %s14
      %p2201 = scmp.lt.s32.totalorder %s2200, 31
      %s2202 = scalar_select %p2201, %s2200, 31
      %s2203 = smul.addr %s2202, 2
      %s2204 = smul.addr %s2203, 8
      %s2205 = scalar_lea.vmem %s3, %s2204
      // Predicated region
      $region33: #{tpu_custom_call.1} parent=31 // pred_check
        %p2206 = pneg %p100
      $region34: #{tpu_custom_call.1} parent=31 // pred_check_branch
        %2208 = sbr.rel (%p2206) target = $region36
      $region35: #{tpu_custom_call.1} parent=31 // pred_region
        %s2209 = smul.u32 16, %s14
      $region36: #{tpu_custom_call.1} parent=31 // pred_fallthru
        _
    $region32: #{tpu_custom_call.1} parent=5 // pred_fallthru
      _
    %p2210 = scmp.le.s32.totalorder 2, %s9
    // Predicated region
    $region37: #{tpu_custom_call.1} parent=5 // pred_check
      %p2211 = pneg %p2210
    $region38: #{tpu_custom_call.1} parent=5 // pred_check_branch
      %2213 = sbr.rel (%p2211) target = $region40
    $region39: #{tpu_custom_call.1} parent=5 // pred_region
      %s2214 = ssub.s32 %s9, 2
      // Predicated region
      $region41: #{tpu_custom_call.1} parent=39 // pred_check
        %p2215 = pneg %p106
      $region42: #{tpu_custom_call.1} parent=39 // pred_check_branch
        %2217 = sbr.rel (%p2215) target = $region44
      $region43: #{tpu_custom_call.1} parent=39 // pred_region
        %s2218 = smul.u32 16, %s15
        %p2219 = scmp.lt.s32.totalorder %s2218, 31
        %s2220 = scalar_select %p2219, %s2218, 31
        %s2221 = smul.addr %s2220, 2
        %s2222 = smul.addr %s2221, 8
        %s2223 = scalar_lea.vmem %s3, %s2222
      $region44: #{tpu_custom_call.1} parent=39 // pred_fallthru
        _
    $region40: #{tpu_custom_call.1} parent=5 // pred_fallthru
      _
  $region6: #{tpu_custom_call.1} parent=0 // loop_footer
    %s13 = sadd.s32 1, %s9
  $region7: #{tpu_custom_call.1} parent=0 // loop_footer_branch
    %8 = sbr.rel target = $region3
  $region8: #{tpu_custom_call.1} parent=0 // loop_exit
    _

</llo_original>
